<compile_context>
chip_gen: v5e
topology: v5e:2x2
jax: 0.10.0
libtpu: 0.0.40
codegen_flags: <defaults>
</compile_context>

<pallas_src>
import functools

import jax
import jax.numpy as jnp
from jax.experimental import pallas as pl
from jax.experimental.pallas import tpu as pltpu


# ----------------------------- Pallas kernels --------------------------------

def _conv3x3_bn_body(x_ref, w_ref, bias_ref, pad_ref, patch_ref, *, stride):
    """3x3 conv (pad=1, given stride) for one batch element.

    BN scale is pre-folded into w_ref (bf16); only the bias add happens here.

    x_ref     : (H, W, Cin)      input tile (f32 or bf16)
    w_ref     : (9*Cin, Cout)    bf16 im2col-reshaped, BN-scale-folded weights
    bias_ref  : (1, Cout)        f32 folded BN bias
    pad_ref   : (H+2, W+2, Cin)  f32 VMEM scratch (zero halo built in-kernel)
    patch_ref : (Ho*Wo, 9*Cin)   bf16 VMEM scratch (im2col slab)
    returns   : (Ho*Wo, Cout)    f32
    """
    H, W, Cin = x_ref.shape
    Ho = (H - 1) // stride + 1
    Wo = (W - 1) // stride + 1

    # Zero only the 1-pixel border each step; the interior is fully overwritten below.
    # (Per-step border zeroing is megacore-safe and far cheaper than a full-buffer memset.)
    zrow = jnp.zeros((1, W + 2, Cin), pad_ref.dtype)
    pad_ref[0:1, :, :] = zrow
    pad_ref[H + 1:H + 2, :, :] = zrow
    zcol = jnp.zeros((H + 2, 1, Cin), pad_ref.dtype)
    pad_ref[:, 0:1, :] = zcol
    pad_ref[:, W + 1:W + 2, :] = zcol
    # In-kernel halo: avoids a host-side jnp.pad (extra HBM pass over x).
    pad_ref[1:H + 1, 1:W + 1, :] = x_ref[...].astype(pad_ref.dtype)

    # im2col: gather the 9 shifted windows into one bf16 (Ho*Wo, 9*Cin) slab so the conv is
    # a single MXU matmul with contraction K = 9*Cin.  Taps are sliced straight off the Ref
    # and cast to bf16 at write time (no giant live f32 slab value).
    for t in range(9):
        ky, kx = divmod(t, 3)
        if stride == 1:
            tap = pad_ref[ky:ky + Ho, kx:kx + Wo, :]
        else:
            # TODO(synk): strided-tap path (stride > 1) is not exercised by the demo (s=1).
            span_h = (Ho - 1) * stride + 1
            span_w = (Wo - 1) * stride + 1
            tap = pad_ref[ky:ky + span_h, kx:kx + span_w, :][::stride, ::stride, :]
        patch_ref[:, t * Cin:(t + 1) * Cin] = (
            tap.reshape(Ho * Wo, Cin).astype(patch_ref.dtype))

    acc = jnp.dot(patch_ref[...], w_ref[...], preferred_element_type=jnp.float32)
    return acc + bias_ref[...]                        # folded BN bias, f32 epilogue


def conv3x3_bn_act_kernel(x_ref, w_ref, bias_ref, o_ref, pad_ref, patch_ref,
                          *, stride, apply_relu):
    """Conv3x3 + BN (+ optional ReLU).  Flat (Ho*Wo, Cout) output block."""
    out = _conv3x3_bn_body(x_ref, w_ref, bias_ref, pad_ref, patch_ref, stride=stride)
    if apply_relu:
        out = jnp.maximum(out, 0.0)
    o_ref[...] = out.astype(o_ref.dtype)


def conv3x3_bn_ds_add_relu_kernel(x_ref, w_ref, bias_ref,
                                  xd_ref, wd_ref, biasd_ref,
                                  o_ref, pad_ref, patch_ref):
    """Fused: conv3x3+BN (main) + conv1x1+BN (downsampled residual) + add + ReLU."""
    out = _conv3x3_bn_body(x_ref, w_ref, bias_ref, pad_ref, patch_ref, stride=1)

    Hd, Wd, Cd = xd_ref.shape
    xd = xd_ref[...].reshape(Hd * Wd, Cd).astype(jnp.bfloat16)
    res = jnp.dot(xd, wd_ref[...], preferred_element_type=jnp.float32) + biasd_ref[...]

    o_ref[...] = jnp.maximum(out + res, 0.0).astype(o_ref.dtype)


# ------------------------------ JAX wrappers ----------------------------------

def _fold_bn(bn, eps=1e-5):
    gamma, beta, mean, var = bn
    scale = (gamma / jnp.sqrt(var + eps)).astype(jnp.float32)     # (Cout,)
    bias = (beta - mean * scale).astype(jnp.float32)              # (Cout,)
    return scale, bias


def _w3x3_bn_folded(w_oihw, scale):
    # OIHW -> (ky, kx, cin, cout) -> (9*cin, cout), BN scale folded per-Cout, bf16 for MXU.
    cout, cin = w_oihw.shape[0], w_oihw.shape[1]
    w = jnp.transpose(w_oihw, (2, 3, 1, 0)).reshape(9 * cin, cout)
    return (w * scale[None, :]).astype(jnp.bfloat16)


def _w1x1_bn_folded(w_oihw, scale):
    cout, cin = w_oihw.shape[0], w_oihw.shape[1]
    w = jnp.transpose(w_oihw.reshape(cout, cin), (1, 0))          # (cin, cout)
    return (w * scale[None, :]).astype(jnp.bfloat16)


def _vmem_limit_bytes():
    # v5e/v6e: 128 MiB physical (default scoped 16/32 MiB) -> use ~64 MiB.
    # v7x: 64 MiB physical -> use ~32 MiB.  Fallback: 32 MiB.
    try:
        cap = pltpu.get_tpu_info().vmem_capacity_bytes
    except Exception:
        cap = 64 * 1024 * 1024
    return min(max(cap // 2, 32 * 1024 * 1024), 100 * 1024 * 1024)


_COMPILER_PARAMS = pltpu.CompilerParams(
    dimension_semantics=("parallel",),
    vmem_limit_bytes=_vmem_limit_bytes(),
)


def conv3x3_bn_act(x_nhwc, w_oihw, bn, *, stride=1, relu=True, out_dtype=jnp.float32):
    N, H, W, Cin = x_nhwc.shape
    Cout = w_oihw.shape[0]
    Ho = (H - 1) // stride + 1
    Wo = (W - 1) // stride + 1
    scale, bias = _fold_bn(bn)
    w = _w3x3_bn_folded(w_oihw, scale)
    bias = bias.reshape(1, Cout)

    kernel = functools.partial(conv3x3_bn_act_kernel, stride=stride, apply_relu=relu)
    out = pl.pallas_call(
        kernel,
        out_shape=jax.ShapeDtypeStruct((N, Ho * Wo, Cout), out_dtype),
        grid=(N,),
        in_specs=[
            pl.BlockSpec((None, H, W, Cin), lambda n: (n, 0, 0, 0)),
            pl.BlockSpec((9 * Cin, Cout), lambda n: (0, 0)),
            pl.BlockSpec((1, Cout), lambda n: (0, 0)),
        ],
        out_specs=pl.BlockSpec((None, Ho * Wo, Cout), lambda n: (n, 0, 0)),
        scratch_shapes=[
            pltpu.VMEM((H + 2, W + 2, Cin), jnp.float32),   # padded input (halo in-kernel)
            pltpu.VMEM((Ho * Wo, 9 * Cin), jnp.bfloat16),   # im2col slab (bf16)
        ],
        compiler_params=_COMPILER_PARAMS,
    )(x_nhwc, w, bias)
    return out.reshape(N, Ho, Wo, Cout)    # free (contiguous) reshape in the wrapper


def conv3x3_bn_ds_add_relu(x_nhwc, w_oihw, bn, xres_nhwc, wd_oihw, bnd):
    """out = relu( bn2(conv3x3(x)) + bnd(conv1x1(x_res)) ), one fused pallas_call."""
    N, H, W, Cin = x_nhwc.shape
    Cout = w_oihw.shape[0]
    Cin_d = xres_nhwc.shape[-1]
    scale, bias = _fold_bn(bn)
    scaled, biasd = _fold_bn(bnd)
    w = _w3x3_bn_folded(w_oihw, scale)
    wd = _w1x1_bn_folded(wd_oihw, scaled)
    bias = bias.reshape(1, Cout)
    biasd = biasd.reshape(1, Cout)

    out = pl.pallas_call(
        conv3x3_bn_ds_add_relu_kernel,
        out_shape=jax.ShapeDtypeStruct((N, H * W, Cout), jnp.float32),
        grid=(N,),
        in_specs=[
            pl.BlockSpec((None, H, W, Cin), lambda n: (n, 0, 0, 0)),
            pl.BlockSpec((9 * Cin, Cout), lambda n: (0, 0)),
            pl.BlockSpec((1, Cout), lambda n: (0, 0)),
            pl.BlockSpec((None, H, W, Cin_d), lambda n: (n, 0, 0, 0)),
            pl.BlockSpec((Cin_d, Cout), lambda n: (0, 0)),
            pl.BlockSpec((1, Cout), lambda n: (0, 0)),
        ],
        out_specs=pl.BlockSpec((None, H * W, Cout), lambda n: (n, 0, 0)),
        scratch_shapes=[
            pltpu.VMEM((H + 2, W + 2, Cin), jnp.float32),
            pltpu.VMEM((H * W, 9 * Cin), jnp.bfloat16),
        ],
        compiler_params=_COMPILER_PARAMS,
    )(x_nhwc, w, bias, xres_nhwc, wd, biasd)
    return out.reshape(N, H, W, Cout)


def basic_block(x_nchw, params, s=1, residual=True):
    """Matches BasicBlock.forward semantics (incl. the quirk that the residual is added
    only when input/output sizes differ; the final ReLU is always applied)."""
    N = x_nchw.shape[0]
    x = jnp.transpose(x_nchw, (0, 2, 3, 1))                        # NCHW -> NHWC

    # h1 kept in bf16: halves its HBM write and its re-read by the fused second kernel.
    h1 = conv3x3_bn_act(x, params["w1"], params["bn1"], stride=s, relu=True,
                        out_dtype=jnp.bfloat16)                    # self.conv
    Ho, Wo = h1.shape[1], h1.shape[2]
    Cout = params["w2"].shape[0]

    out_size_nchw = (N, Cout, Ho, Wo)
    if residual and (tuple(x_nchw.shape) != out_size_nchw):
        x_ds = x[:, ::s, ::s, :] if s > 1 else x                   # exact for k=1, p=0
        out = conv3x3_bn_ds_add_relu(h1, params["w2"], params["bn2"],      # conv2 + BN
                                     x_ds, params["wd"], params["bnd"])    # + downsample + add + ReLU
    else:
        out = conv3x3_bn_act(h1, params["w2"], params["bn2"], stride=1, relu=True,
                             out_dtype=jnp.float32)
    return jnp.transpose(out, (0, 3, 1, 2))                        # NHWC -> NCHW


# ------------------------- pure-JAX reference (check) --------------------------

def basic_block_ref(x_nchw, params, s=1, residual=True, eps=1e-5):
    """Mirrors the kernel's bf16-operand / f32-accumulation numerics (BN applied post-conv)."""
    x = jnp.transpose(x_nchw, (0, 2, 3, 1))

    def conv_bn(h, w_oihw, bn, stride, pad, relu):
        g, b, m, v = bn
        y = jax.lax.conv_general_dilated(
            h.astype(jnp.bfloat16),
            jnp.transpose(w_oihw, (2, 3, 1, 0)).astype(jnp.bfloat16),
            (stride, stride), [(pad, pad), (pad, pad)],
            dimension_numbers=("NHWC", "HWIO", "NHWC"),
            preferred_element_type=jnp.float32)
        y = (y - m) / jnp.sqrt(v + eps) * g + b
        return jnp.maximum(y, 0.0) if relu else y

    out = conv_bn(x, params["w1"], params["bn1"], s, 1, True)
    out = conv_bn(out, params["w2"], params["bn2"], 1, 1, False)
    out_size_nchw = (out.shape[0], out.shape[3], out.shape[1], out.shape[2])
    if residual and (tuple(x_nchw.shape) != out_size_nchw):
        out = out + conv_bn(x, params["wd"], params["bnd"], s, 0, False)
    out = jnp.maximum(out, 0.0)
    return jnp.transpose(out, (0, 3, 1, 2))


# ----------------------------------- main --------------------------------------

def _bn_params(c, seed):
    i = jnp.arange(c, dtype=jnp.float32)
    gamma = 1.0 + 0.05 * jnp.cos(i + seed)
    beta = 0.1 * jnp.sin(i + seed)
    mean = 0.05 * jnp.sin(0.5 * i + seed)
    var = 1.0 + 0.1 * jnp.abs(jnp.cos(0.3 * i + seed))
    return gamma, beta, mean, var


if __name__ == "__main__":
    N, cin, mid, cout = 2, 4, 8, 16
    H = W = 16
    s = 1  # cin != cout -> sizes differ -> fused residual/downsample path is exercised

    key = jax.random.PRNGKey(0)
    k1, k2, k3, kx = jax.random.split(key, 4)
    params = {
        "w1": 0.1 * jax.random.normal(k1, (mid, cin, 3, 3), jnp.float32),   # OIHW
        "w2": 0.1 * jax.random.normal(k2, (cout, mid, 3, 3), jnp.float32),
        "wd": 0.1 * jax.random.normal(k3, (cout, cin, 1, 1), jnp.float32),
        "bn1": _bn_params(mid, 1.0),
        "bn2": _bn_params(cout, 2.0),
        "bnd": _bn_params(cout, 3.0),
    }

    x = jax.random.normal(kx, (N, cin, H, W), jnp.float32)

    out = basic_block(x, params, s=s, residual=True)
    out = jax.block_until_ready(out)

    ref = basic_block_ref(x, params, s=s, residual=True)
    assert out.shape == (N, cout, H, W), out.shape
    # bf16 MXU operands (f32 accumulation) on both sides + BN scale folded into bf16 weights
    # and a bf16 h1 intermediate in the kernel -> loose-ish tolerance for ulp drift.
    max_err = float(jnp.max(jnp.abs(out - ref)))
    assert max_err < 4e-2, f"mismatch vs reference: {max_err}"

    print("KERNEL_OK")
</pallas_src>

<mosaic_0001>
module attributes {stable_mosaic.version = 11 : i64} {
  func.func @conv3x3_bn_act_kernel(%arg0: i32, %arg1: memref<1x16x16x4xf32, #tpu.memory_space<vmem>>, %arg2: memref<36x8xbf16, #tpu.memory_space<vmem>>, %arg3: memref<1x8xf32, #tpu.memory_space<vmem>>, %arg4: memref<1x256x8xbf16, #tpu.memory_space<vmem>>, %arg5: memref<18x18x4xf32, #tpu.memory_space<vmem>>, %arg6: memref<256x36xbf16, #tpu.memory_space<vmem>>) attributes {dimension_semantics = [#tpu.dimension_semantics<parallel>], iteration_bounds = array<i64: 2>, scalar_prefetch = 0 : i64, scratch_operands = 2 : i64, tpu.core_type = #tpu.core_type<tc>, window_params = [{transform_indices = @transform_0, window_bounds = array<i64: 1, 16, 16, 4>}, {pipeline_mode = #tpu.pipeline_mode<synchronous>, transform_indices = @transform_1, window_bounds = array<i64: 36, 8>}, {pipeline_mode = #tpu.pipeline_mode<synchronous>, transform_indices = @transform_2, window_bounds = array<i64: 1, 8>}, {transform_indices = @transform_3, window_bounds = array<i64: 1, 256, 8>}]} {
    %cst = arith.constant 0.000000e+00 : f32
    %0 = vector.broadcast %cst : f32 to vector<1x18x4xf32>
    %c0 = arith.constant 0 : index
    %c0_0 = arith.constant 0 : index
    %c0_1 = arith.constant 0 : index
    %1 = vector.load %arg5[%c0, %c0_0, %c0_1] : memref<18x18x4xf32, #tpu.memory_space<vmem>>, vector<1x18x4xf32>
    tpu.vector_store %arg5[%c0, %c0_0, %c0_1], %0 {strides = array<i32>} : memref<18x18x4xf32, #tpu.memory_space<vmem>>, vector<1x18x4xf32>,
    %c17 = arith.constant 17 : index
    %c0_2 = arith.constant 0 : index
    %c0_3 = arith.constant 0 : index
    %2 = vector.load %arg5[%c17, %c0_2, %c0_3] : memref<18x18x4xf32, #tpu.memory_space<vmem>>, vector<1x18x4xf32>
    tpu.vector_store %arg5[%c17, %c0_2, %c0_3], %0 {strides = array<i32>} : memref<18x18x4xf32, #tpu.memory_space<vmem>>, vector<1x18x4xf32>,
    %cst_4 = arith.constant 0.000000e+00 : f32
    %3 = vector.broadcast %cst_4 : f32 to vector<18x1x4xf32>
    %c0_5 = arith.constant 0 : index
    %c0_6 = arith.constant 0 : index
    %c0_7 = arith.constant 0 : index
    %4 = vector.load %arg5[%c0_5, %c0_6, %c0_7] : memref<18x18x4xf32, #tpu.memory_space<vmem>>, vector<18x1x4xf32>
    tpu.vector_store %arg5[%c0_5, %c0_6, %c0_7], %3 {strides = array<i32>} : memref<18x18x4xf32, #tpu.memory_space<vmem>>, vector<18x1x4xf32>,
    %c0_8 = arith.constant 0 : index
    %c17_9 = arith.constant 17 : index
    %c0_10 = arith.constant 0 : index
    %5 = vector.load %arg5[%c0_8, %c17_9, %c0_10] : memref<18x18x4xf32, #tpu.memory_space<vmem>>, vector<18x1x4xf32>
    tpu.vector_store %arg5[%c0_8, %c17_9, %c0_10], %3 {strides = array<i32>} : memref<18x18x4xf32, #tpu.memory_space<vmem>>, vector<18x1x4xf32>,
    %c0_11 = arith.constant 0 : index
    %c0_12 = arith.constant 0 : index
    %c0_13 = arith.constant 0 : index
    %c0_14 = arith.constant 0 : index
    %6 = vector.load %arg1[%c0_11, %c0_12, %c0_13, %c0_14] : memref<1x16x16x4xf32, #tpu.memory_space<vmem>>, vector<1x16x16x4xf32>
    %7 = vector.shape_cast %6 : vector<1x16x16x4xf32> to vector<16x16x4xf32>
    %c1 = arith.constant 1 : index
    %c1_15 = arith.constant 1 : index
    %c0_16 = arith.constant 0 : index
    %8 = vector.load %arg5[%c1, %c1_15, %c0_16] : memref<18x18x4xf32, #tpu.memory_space<vmem>>, vector<16x16x4xf32>
    tpu.vector_store %arg5[%c1, %c1_15, %c0_16], %7 {strides = array<i32>} : memref<18x18x4xf32, #tpu.memory_space<vmem>>, vector<16x16x4xf32>,
    %c0_17 = arith.constant 0 : index
    %c0_18 = arith.constant 0 : index
    %c0_19 = arith.constant 0 : index
    %9 = vector.load %arg5[%c0_17, %c0_18, %c0_19] : memref<18x18x4xf32, #tpu.memory_space<vmem>>, vector<16x16x4xf32>
    %10 = vector.shape_cast %9 : vector<16x16x4xf32> to vector<256x4xf32>
    %11 = arith.truncf %10 : vector<256x4xf32> to vector<256x4xbf16>
    %c0_20 = arith.constant 0 : index
    %c0_21 = arith.constant 0 : index
    %12 = vector.load %arg6[%c0_20, %c0_21] : memref<256x36xbf16, #tpu.memory_space<vmem>>, vector<256x4xbf16>
    tpu.vector_store %arg6[%c0_20, %c0_21], %11 {strides = array<i32>} : memref<256x36xbf16, #tpu.memory_space<vmem>>, vector<256x4xbf16>,
    %c0_22 = arith.constant 0 : index
    %c1_23 = arith.constant 1 : index
    %c0_24 = arith.constant 0 : index
    %13 = vector.load %arg5[%c0_22, %c1_23, %c0_24] : memref<18x18x4xf32, #tpu.memory_space<vmem>>, vector<16x16x4xf32>
    %14 = vector.shape_cast %13 : vector<16x16x4xf32> to vector<256x4xf32>
    %15 = arith.truncf %14 : vector<256x4xf32> to vector<256x4xbf16>
    %c0_25 = arith.constant 0 : index
    %c4 = arith.constant 4 : index
    %16 = vector.load %arg6[%c0_25, %c4] : memref<256x36xbf16, #tpu.memory_space<vmem>>, vector<256x4xbf16>
    tpu.vector_store %arg6[%c0_25, %c4], %15 {strides = array<i32>} : memref<256x36xbf16, #tpu.memory_space<vmem>>, vector<256x4xbf16>,
    %c0_26 = arith.constant 0 : index
    %c2 = arith.constant 2 : index
    %c0_27 = arith.constant 0 : index
    %17 = vector.load %arg5[%c0_26, %c2, %c0_27] : memref<18x18x4xf32, #tpu.memory_space<vmem>>, vector<16x16x4xf32>
    %18 = vector.shape_cast %17 : vector<16x16x4xf32> to vector<256x4xf32>
    %19 = arith.truncf %18 : vector<256x4xf32> to vector<256x4xbf16>
    %c0_28 = arith.constant 0 : index
    %c8 = arith.constant 8 : index
    %20 = vector.load %arg6[%c0_28, %c8] : memref<256x36xbf16, #tpu.memory_space<vmem>>, vector<256x4xbf16>
    tpu.vector_store %arg6[%c0_28, %c8], %19 {strides = array<i32>} : memref<256x36xbf16, #tpu.memory_space<vmem>>, vector<256x4xbf16>,
    %c1_29 = arith.constant 1 : index
    %c0_30 = arith.constant 0 : index
    %c0_31 = arith.constant 0 : index
    %21 = vector.load %arg5[%c1_29, %c0_30, %c0_31] : memref<18x18x4xf32, #tpu.memory_space<vmem>>, vector<16x16x4xf32>
    %22 = vector.shape_cast %21 : vector<16x16x4xf32> to vector<256x4xf32>
    %23 = arith.truncf %22 : vector<256x4xf32> to vector<256x4xbf16>
    %c0_32 = arith.constant 0 : index
    %c12 = arith.constant 12 : index
    %24 = vector.load %arg6[%c0_32, %c12] : memref<256x36xbf16, #tpu.memory_space<vmem>>, vector<256x4xbf16>
    tpu.vector_store %arg6[%c0_32, %c12], %23 {strides = array<i32>} : memref<256x36xbf16, #tpu.memory_space<vmem>>, vector<256x4xbf16>,
    %c1_33 = arith.constant 1 : index
    %c1_34 = arith.constant 1 : index
    %c0_35 = arith.constant 0 : index
    %25 = vector.load %arg5[%c1_33, %c1_34, %c0_35] : memref<18x18x4xf32, #tpu.memory_space<vmem>>, vector<16x16x4xf32>
    %26 = vector.shape_cast %25 : vector<16x16x4xf32> to vector<256x4xf32>
    %27 = arith.truncf %26 : vector<256x4xf32> to vector<256x4xbf16>
    %c0_36 = arith.constant 0 : index
    %c16 = arith.constant 16 : index
    %28 = vector.load %arg6[%c0_36, %c16] : memref<256x36xbf16, #tpu.memory_space<vmem>>, vector<256x4xbf16>
    tpu.vector_store %arg6[%c0_36, %c16], %27 {strides = array<i32>} : memref<256x36xbf16, #tpu.memory_space<vmem>>, vector<256x4xbf16>,
    %c1_37 = arith.constant 1 : index
    %c2_38 = arith.constant 2 : index
    %c0_39 = arith.constant 0 : index
    %29 = vector.load %arg5[%c1_37, %c2_38, %c0_39] : memref<18x18x4xf32, #tpu.memory_space<vmem>>, vector<16x16x4xf32>
    %30 = vector.shape_cast %29 : vector<16x16x4xf32> to vector<256x4xf32>
    %31 = arith.truncf %30 : vector<256x4xf32> to vector<256x4xbf16>
    %c0_40 = arith.constant 0 : index
    %c20 = arith.constant 20 : index
    %32 = vector.load %arg6[%c0_40, %c20] : memref<256x36xbf16, #tpu.memory_space<vmem>>, vector<256x4xbf16>
    tpu.vector_store %arg6[%c0_40, %c20], %31 {strides = array<i32>} : memref<256x36xbf16, #tpu.memory_space<vmem>>, vector<256x4xbf16>,
    %c2_41 = arith.constant 2 : index
    %c0_42 = arith.constant 0 : index
    %c0_43 = arith.constant 0 : index
    %33 = vector.load %arg5[%c2_41, %c0_42, %c0_43] : memref<18x18x4xf32, #tpu.memory_space<vmem>>, vector<16x16x4xf32>
    %34 = vector.shape_cast %33 : vector<16x16x4xf32> to vector<256x4xf32>
    %35 = arith.truncf %34 : vector<256x4xf32> to vector<256x4xbf16>
    %c0_44 = arith.constant 0 : index
    %c24 = arith.constant 24 : index
    %36 = vector.load %arg6[%c0_44, %c24] : memref<256x36xbf16, #tpu.memory_space<vmem>>, vector<256x4xbf16>
    tpu.vector_store %arg6[%c0_44, %c24], %35 {strides = array<i32>} : memref<256x36xbf16, #tpu.memory_space<vmem>>, vector<256x4xbf16>,
    %c2_45 = arith.constant 2 : index
    %c1_46 = arith.constant 1 : index
    %c0_47 = arith.constant 0 : index
    %37 = vector.load %arg5[%c2_45, %c1_46, %c0_47] : memref<18x18x4xf32, #tpu.memory_space<vmem>>, vector<16x16x4xf32>
    %38 = vector.shape_cast %37 : vector<16x16x4xf32> to vector<256x4xf32>
    %39 = arith.truncf %38 : vector<256x4xf32> to vector<256x4xbf16>
    %c0_48 = arith.constant 0 : index
    %c28 = arith.constant 28 : index
    %40 = vector.load %arg6[%c0_48, %c28] : memref<256x36xbf16, #tpu.memory_space<vmem>>, vector<256x4xbf16>
    tpu.vector_store %arg6[%c0_48, %c28], %39 {strides = array<i32>} : memref<256x36xbf16, #tpu.memory_space<vmem>>, vector<256x4xbf16>,
    %c2_49 = arith.constant 2 : index
    %c2_50 = arith.constant 2 : index
    %c0_51 = arith.constant 0 : index
    %41 = vector.load %arg5[%c2_49, %c2_50, %c0_51] : memref<18x18x4xf32, #tpu.memory_space<vmem>>, vector<16x16x4xf32>
    %42 = vector.shape_cast %41 : vector<16x16x4xf32> to vector<256x4xf32>
    %43 = arith.truncf %42 : vector<256x4xf32> to vector<256x4xbf16>
    %c0_52 = arith.constant 0 : index
    %c32 = arith.constant 32 : index
    %44 = vector.load %arg6[%c0_52, %c32] : memref<256x36xbf16, #tpu.memory_space<vmem>>, vector<256x4xbf16>
    tpu.vector_store %arg6[%c0_52, %c32], %43 {strides = array<i32>} : memref<256x36xbf16, #tpu.memory_space<vmem>>, vector<256x4xbf16>,
    %c0_53 = arith.constant 0 : index
    %c0_54 = arith.constant 0 : index
    %45 = vector.load %arg6[%c0_53, %c0_54] : memref<256x36xbf16, #tpu.memory_space<vmem>>, vector<256x36xbf16>
    %c0_55 = arith.constant 0 : index
    %c0_56 = arith.constant 0 : index
    %46 = vector.load %arg2[%c0_55, %c0_56] : memref<36x8xbf16, #tpu.memory_space<vmem>>, vector<36x8xbf16>
    %cst_57 = arith.constant dense<0.000000e+00> : vector<256x8xf32>
    %47 = tpu.matmul %45, %46, %cst_57 {dimension_numbers = #tpu.dot_dimension_numbers<[1], [0], [0], [1], [0, 0, 1, 1], [], []>} : vector<256x36xbf16>, vector<36x8xbf16>, vector<256x8xf32> -> vector<256x8xf32>
    %c0_58 = arith.constant 0 : index
    %c0_59 = arith.constant 0 : index
    %48 = vector.load %arg3[%c0_58, %c0_59] : memref<1x8xf32, #tpu.memory_space<vmem>>, vector<1x8xf32>
    %49 = vector.broadcast %48 : vector<1x8xf32> to vector<256x8xf32>
    %50 = arith.addf %47, %49 : vector<256x8xf32>
    %cst_60 = arith.constant 0.000000e+00 : f32
    %51 = vector.broadcast %cst_60 : f32 to vector<256x8xf32>
    %52 = arith.maximumf %50, %51 : vector<256x8xf32>
    %53 = arith.truncf %52 : vector<256x8xf32> to vector<256x8xbf16>
    %c0_61 = arith.constant 0 : index
    %c0_62 = arith.constant 0 : index
    %c0_63 = arith.constant 0 : index
    %54 = vector.load %arg4[%c0_61, %c0_62, %c0_63] : memref<1x256x8xbf16, #tpu.memory_space<vmem>>, vector<1x256x8xbf16>
    %55 = vector.shape_cast %54 : vector<1x256x8xbf16> to vector<256x8xbf16>
    %56 = vector.shape_cast %53 : vector<256x8xbf16> to vector<1x256x8xbf16>
    tpu.vector_store %arg4[%c0_61, %c0_62, %c0_63], %56 {strides = array<i32>} : memref<1x256x8xbf16, #tpu.memory_space<vmem>>, vector<1x256x8xbf16>,
    return
  }
  func.func @transform_0(%arg0: i32) -> (i32, i32, i32, i32) {
    %c0_i32 = arith.constant 0 : i32
    %c0_i32_0 = arith.constant 0 : i32
    %c0_i32_1 = arith.constant 0 : i32
    %c0_i32_2 = arith.constant 0 : i32
    return %arg0, %c0_i32, %c0_i32_0, %c0_i32_1 : i32, i32, i32, i32
  }
  func.func @transform_1(%arg0: i32) -> (i32, i32) {
    %c0_i32 = arith.constant 0 : i32
    %c0_i32_0 = arith.constant 0 : i32
    %c0_i32_1 = arith.constant 0 : i32
    return %c0_i32, %c0_i32_0 : i32, i32
  }
  func.func @transform_2(%arg0: i32) -> (i32, i32) {
    %c0_i32 = arith.constant 0 : i32
    %c0_i32_0 = arith.constant 0 : i32
    %c0_i32_1 = arith.constant 0 : i32
    return %c0_i32, %c0_i32_0 : i32, i32
  }
  func.func @transform_3(%arg0: i32) -> (i32, i32, i32) {
    %c0_i32 = arith.constant 0 : i32
    %c0_i32_0 = arith.constant 0 : i32
    %c0_i32_1 = arith.constant 0 : i32
    return %arg0, %c0_i32, %c0_i32_0 : i32, i32, i32
  }
}

</mosaic_0001>

<llo_original>
// kernel: tpu_custom_call.1
$region0: #{tpu_custom_call.1}
  #allocation0 [shape = 'u32[]', space=smem, size = 0x4, offset = 0x4, fixed_abs, tag = 'smem constant byte address 0x4 - core index']
  #allocation1 [shape = 'u32[72,128]{1,0:T(1,128)}', space=vmem, size = 0x9000, scoped, tag = 'internal scratch']
  #allocation2 [shape = 'f32[18,18,4]{2,1,0:T(8,128)}', space=vmem, size = 0x36000, scoped, tag = 'scratch operand']
  #allocation3 [shape = 'bf16[256,36]{1,0:T(8,128)(2,1)}', space=vmem, size = 0x10000, scoped, tag = 'scratch operand']
  %s0 = inlined_call_operand.vmem [shape: f32[2,16,16,4], index: 0, kind: input, shape index: {}]
  %s1 = inlined_call_operand.vmem [shape: bf16[36,8], index: 1, kind: input, shape index: {}]
  %s2 = inlined_call_operand.vmem [shape: f32[1,8], index: 2, kind: input, shape index: {}]
  %s3 = inlined_call_operand.vmem [shape: bf16[2,256,8], index: 3, kind: output, shape index: {}]
  %s4 = sld [smem:[#allocation0]]
  $region45: #{tpu_custom_call.1} parent=0
    _
  %s6 = ssub.s32 1, %s4
  %s7 = scalar_select 0, %s6, %s4
  loop: start=0, step=1, limit=4
  $region2: #{tpu_custom_call.1} parent=0 // loop_pre_header
    _
  $region3: #{tpu_custom_call.1} parent=0 // loop_header
    %s9 = sphi 0, %s13
    %p10 = scmp.ge.s32.totalorder %s9, 4
    %s19 = sphi 0, %s21
    %s22 = sphi 0, %s19
    %s23 = sphi 0, %s22
    %s39 = sphi 0, %s23
    %s43 = sphi 0, %s43
    %s45 = sphi 0, %s43
    %s46 = sphi 0, %s45
    %s60 = sphi 0, %s46
    %s64 = sphi 0, %s64
    %s66 = sphi 0, %s64
    %s67 = sphi 0, %s66
    %s81 = sphi 0, %s67
    %s87 = sphi 0, %s89
    %s90 = sphi 0, %s87
    %s91 = sphi 0, %s90
    %s107 = sphi 0, %s91
  $region4: #{tpu_custom_call.1} parent=0 // loop_header_branch
    %12 = sbr.rel (%p10) target = $region8
  $region5: #{tpu_custom_call.1} parent=0 // loop_body
    %s14 = ssub.s32 %s9, 1
    %s15 = ssub.s32 %s9, 2
    %s16 = sadd.s32 %s9, 1
    %s17 = ssub.s32 %s9, %s16
    %p18 = scmp.eq.s32.totalorder %s17, 0
    %s20 = sadd.s32 %s19, 1
    %s21 = scalar_select %p18, %s19, %s20
    %p24 = pneg %p18
    %p25 = scmp.eq.s32.totalorder %s9, 1
    %p26 = por %p24, %p25
    %p27 = scmp.ne.s32.totalorder %s19, %s22
    %p28 = scmp.eq.s32.totalorder %s9, 0
    %p29 = por %p27, %p28
    %p30 = scmp.ne.s32.totalorder %s19, %s22
    %p31 = scmp.eq.s32.totalorder %s14, 1
    %p32 = por %p30, %p31
    %p33 = scmp.ne.s32.totalorder %s22, %s23
    %p34 = scmp.eq.s32.totalorder %s14, 0
    %p35 = por %p33, %p34
    %p36 = scmp.ne.s32.totalorder %s22, %s23
    %p37 = scmp.eq.s32.totalorder %s15, 1
    %p38 = por %p36, %p37
    %p40 = scmp.ne.s32.totalorder %s23, %s39
    %p41 = scmp.eq.s32.totalorder %s15, 0
    %p42 = por %p40, %p41
    %s44 = sadd.s32 %s43, 1
    %p47 = scmp.eq.s32.totalorder %s9, 1
    %p48 = scmp.ne.s32.totalorder %s43, %s45
    %p49 = scmp.eq.s32.totalorder %s9, 0
    %p50 = por %p48, %p49
    %p51 = scmp.ne.s32.totalorder %s43, %s45
    %p52 = scmp.eq.s32.totalorder %s14, 1
    %p53 = por %p51, %p52
    %p54 = scmp.ne.s32.totalorder %s45, %s46
    %p55 = scmp.eq.s32.totalorder %s14, 0
    %p56 = por %p54, %p55
    %p57 = scmp.ne.s32.totalorder %s45, %s46
    %p58 = scmp.eq.s32.totalorder %s15, 1
    %p59 = por %p57, %p58
    %p61 = scmp.ne.s32.totalorder %s46, %s60
    %p62 = scmp.eq.s32.totalorder %s15, 0
    %p63 = por %p61, %p62
    %s65 = sadd.s32 %s64, 1
    %p68 = scmp.eq.s32.totalorder %s9, 1
    %p69 = scmp.ne.s32.totalorder %s64, %s66
    %p70 = scmp.eq.s32.totalorder %s9, 0
    %p71 = por %p69, %p70
    %p72 = scmp.ne.s32.totalorder %s64, %s66
    %p73 = scmp.eq.s32.totalorder %s14, 1
    %p74 = por %p72, %p73
    %p75 = scmp.ne.s32.totalorder %s66, %s67
    %p76 = scmp.eq.s32.totalorder %s14, 0
    %p77 = por %p75, %p76
    %p78 = scmp.ne.s32.totalorder %s66, %s67
    %p79 = scmp.eq.s32.totalorder %s15, 1
    %p80 = por %p78, %p79
    %p82 = scmp.ne.s32.totalorder %s67, %s81
    %p83 = scmp.eq.s32.totalorder %s15, 0
    %p84 = por %p82, %p83
    %s85 = ssub.s32 %s9, %s16
    %p86 = scmp.eq.s32.totalorder %s85, 0
    %s88 = sadd.s32 %s87, 1
    %s89 = scalar_select %p86, %s87, %s88
    %p92 = pneg %p86
    %p93 = scmp.eq.s32.totalorder %s9, 1
    %p94 = por %p92, %p93
    %p95 = scmp.ne.s32.totalorder %s87, %s90
    %p96 = scmp.eq.s32.totalorder %s9, 0
    %p97 = por %p95, %p96
    %p98 = scmp.ne.s32.totalorder %s87, %s90
    %p99 = scmp.eq.s32.totalorder %s14, 1
    %p100 = por %p98, %p99
    %p101 = scmp.ne.s32.totalorder %s90, %s91
    %p102 = scmp.eq.s32.totalorder %s14, 0
    %p103 = por %p101, %p102
    %p104 = scmp.ne.s32.totalorder %s90, %s91
    %p105 = scmp.eq.s32.totalorder %s15, 1
    %p106 = por %p104, %p105
    %p108 = scmp.ne.s32.totalorder %s91, %s107
    %p109 = scmp.eq.s32.totalorder %s15, 0
    %p110 = por %p108, %p109
    %p111 = scmp.le.s32.totalorder 1, %s9
    %p112 = scmp.lt.s32.totalorder %s9, 3
    %p113 = pnand %p111, %p112
    %p114 = pneg %p113
    // Predicated region
    $region9: #{tpu_custom_call.1} parent=5 // pred_check
      _
    $region10: #{tpu_custom_call.1} parent=5 // pred_check_branch
      %116 = sbr.rel (%p113) target = $region12
    $region11: #{tpu_custom_call.1} parent=5 // pred_region
      %s117 = ssub.s32 %s9, 1
      // Predicated region
      $region13: #{tpu_custom_call.1} parent=11 // pred_check
        %p118 = pneg %p56
      $region14: #{tpu_custom_call.1} parent=11 // pred_check_branch
        %120 = sbr.rel (%p118) target = $region16
      $region15: #{tpu_custom_call.1} parent=11 // pred_region
        _
      $region16: #{tpu_custom_call.1} parent=11 // pred_fallthru
        _
      // Predicated region
      $region17: #{tpu_custom_call.1} parent=11 // pred_check
        %p121 = pneg %p77
      $region18: #{tpu_custom_call.1} parent=11 // pred_check_branch
        %123 = sbr.rel (%p121) target = $region20
      $region19: #{tpu_custom_call.1} parent=11 // pred_region
        _
      $region20: #{tpu_custom_call.1} parent=11 // pred_fallthru
        _
    $region12: #{tpu_custom_call.1} parent=5 // pred_fallthru
      _
    %p124 = scmp.lt.s32.totalorder %s9, 2
    // Predicated region
    $region21: #{tpu_custom_call.1} parent=5 // pred_check
      %p125 = pneg %p124
    $region22: #{tpu_custom_call.1} parent=5 // pred_check_branch
      %127 = sbr.rel (%p125) target = $region24
    $region23: #{tpu_custom_call.1} parent=5 // pred_region
      // Predicated region
      $region25: #{tpu_custom_call.1} parent=23 // pred_check
        %p128 = pneg %p29
      $region26: #{tpu_custom_call.1} parent=23 // pred_check_branch
        %130 = sbr.rel (%p128) target = $region28
      $region27: #{tpu_custom_call.1} parent=23 // pred_region
        %p131 = scmp.lt.s32.totalorder %s9, 1
        %s132 = scalar_select %p131, %s9, 1
        %s133 = smul.addr %s132, 32
        %s134 = smul.addr %s133, 8
        %s135 = scalar_lea.vmem %s0, %s134
      $region28: #{tpu_custom_call.1} parent=23 // pred_fallthru
        _
    $region24: #{tpu_custom_call.1} parent=5 // pred_fallthru
      _
    %p136 = scmp.le.s32.totalorder 1, %s9
    %p137 = scmp.lt.s32.totalorder %s9, 3
    %p138 = pnand %p136, %p137
    %p139 = pneg %p138
    // Predicated region
    $region29: #{tpu_custom_call.1} parent=5 // pred_check
      _
    $region30: #{tpu_custom_call.1} parent=5 // pred_check_branch
      %141 = sbr.rel (%p138) target = $region32
    $region31: #{tpu_custom_call.1} parent=5 // pred_region
      %s142 = ssub.s32 %s9, 1
      %p143 = scmp.lt.s32.totalorder %s14, 1
      %s144 = scalar_select %p143, %s14, 1
      %s145 = smul.addr %s144, 32
      %s146 = smul.addr %s145, 8
      %s147 = scalar_lea.vmem %s0, %s146
      %p148 = pneg %p35
      %p149 = pneg %p32
      %p150 = pneg %p56
      %p151 = pneg %p53
      %p152 = pneg %p77
      %p153 = pneg %p74
      %p154 = pneg %p103
      %p155 = pneg %p100
      %p156 = scmp.lt.s32.totalorder %s14, 1
      %s157 = scalar_select %p156, %s14, 1
      %s158 = smul.addr %s157, 32
      %s159 = smul.addr %s158, 4
      %s160 = scalar_lea.vmem %s3, %s159
      %p161 = scmp.lt.s32.totalorder %s14, 1
      %s162 = scalar_select %p161, %s14, 1
      %s163 = smul.addr %s162, 32
      %s164 = smul.addr %s163, 8
      %s165 = scalar_lea.vmem %s0, %s164
      %p166 = scmp.lt.s32.totalorder %s14, 1
      %s167 = scalar_select %p166, %s14, 1
      %s168 = smul.addr %s167, 32
      %s169 = smul.addr %s168, 4
      %s170 = scalar_lea.vmem %s3, %s169
      %vm172 = vcmask 31744
      %173 = vst.msk [vmem:[#allocation2] sm:$0xff] %vm172, 0.0
      %174 = vst.msk [vmem:[#allocation2 + $0x8] sm:$0xff] %vm172, 0.0
      %vm175 = vcmask 25600
      %176 = vst.msk [vmem:[#allocation2 + $0x10] sm:$0x3] %vm175, 0.0
      %s177 = scalar_lea.vmem [#allocation2], 408
      %178 = vst.msk [vmem:[%s177] sm:$0xff] %vm172, 0.0
      %179 = vst.msk [vmem:[%s177 + $0x8] sm:$0xff] %vm172, 0.0
      %180 = vst.msk [vmem:[%s177 + $0x10] sm:$0x3] %vm175, 0.0
      %vm181 = vcmask 24576
      %182 = vst.msk [vmem:[#allocation2] sm:$0x1] %vm181, 0.0
      %183 = vst.msk [vmem:[#allocation2 + $0x18] sm:$0x1] %vm181, 0.0
      %184 = vst.msk [vmem:[#allocation2 + $0x30] sm:$0x1] %vm181, 0.0
      %185 = vst.msk [vmem:[#allocation2 + $0x48] sm:$0x1] %vm181, 0.0
      %186 = vst.msk [vmem:[#allocation2 + $0x60] sm:$0x1] %vm181, 0.0
      %187 = vst.msk [vmem:[#allocation2 + $0x78] sm:$0x1] %vm181, 0.0
      %188 = vst.msk [vmem:[#allocation2 + $0x90] sm:$0x1] %vm181, 0.0
      %189 = vst.msk [vmem:[#allocation2 + $0xa8] sm:$0x1] %vm181, 0.0
      %190 = vst.msk [vmem:[#allocation2 + $0xc0] sm:$0x1] %vm181, 0.0
      %191 = vst.msk [vmem:[#allocation2 + $0xd8] sm:$0x1] %vm181, 0.0
      %192 = vst.msk [vmem:[#allocation2 + $0xf0] sm:$0x1] %vm181, 0.0
      %193 = vst.msk [vmem:[#allocation2 + $0x108] sm:$0x1] %vm181, 0.0
      %194 = vst.msk [vmem:[#allocation2 + $0x120] sm:$0x1] %vm181, 0.0
      %195 = vst.msk [vmem:[#allocation2 + $0x138] sm:$0x1] %vm181, 0.0
      %196 = vst.msk [vmem:[#allocation2 + $0x150] sm:$0x1] %vm181, 0.0
      %197 = vst.msk [vmem:[#allocation2 + $0x168] sm:$0x1] %vm181, 0.0
      %198 = vst.msk [vmem:[#allocation2 + $0x180] sm:$0x1] %vm181, 0.0
      %199 = vst.msk [vmem:[#allocation2 + $0x198] sm:$0x1] %vm181, 0.0
      %200 = vst.msk [vmem:[#allocation2 + $0x11] sm:$0x1] %vm181, 0.0
      %201 = vst.msk [vmem:[#allocation2 + $0x29] sm:$0x1] %vm181, 0.0
      %202 = vst.msk [vmem:[#allocation2 + $0x41] sm:$0x1] %vm181, 0.0
      %203 = vst.msk [vmem:[#allocation2 + $0x59] sm:$0x1] %vm181, 0.0
      %204 = vst.msk [vmem:[#allocation2 + $0x71] sm:$0x1] %vm181, 0.0
      %205 = vst.msk [vmem:[#allocation2 + $0x89] sm:$0x1] %vm181, 0.0
      %206 = vst.msk [vmem:[#allocation2 + $0xa1] sm:$0x1] %vm181, 0.0
      %207 = vst.msk [vmem:[#allocation2 + $0xb9] sm:$0x1] %vm181, 0.0
      %208 = vst.msk [vmem:[#allocation2 + $0xd1] sm:$0x1] %vm181, 0.0
      %209 = vst.msk [vmem:[#allocation2 + $0xe9] sm:$0x1] %vm181, 0.0
      %210 = vst.msk [vmem:[#allocation2 + $0x101] sm:$0x1] %vm181, 0.0
      %211 = vst.msk [vmem:[#allocation2 + $0x119] sm:$0x1] %vm181, 0.0
      %212 = vst.msk [vmem:[#allocation2 + $0x131] sm:$0x1] %vm181, 0.0
      %213 = vst.msk [vmem:[#allocation2 + $0x149] sm:$0x1] %vm181, 0.0
      %214 = vst.msk [vmem:[#allocation2 + $0x161] sm:$0x1] %vm181, 0.0
      %215 = vst.msk [vmem:[#allocation2 + $0x179] sm:$0x1] %vm181, 0.0
      %216 = vst.msk [vmem:[#allocation2 + $0x191] sm:$0x1] %vm181, 0.0
      %217 = vst.msk [vmem:[#allocation2 + $0x1a9] sm:$0x1] %vm181, 0.0
      %v218 = vld [vmem:[%s165] sm:$0xff]
      %v219 = vld [vmem:[%s165 + $0x8] sm:$0xff]
      %v220 = vld [vmem:[%s165 + $0x10] sm:$0xff]
      %v221 = vld [vmem:[%s165 + $0x18] sm:$0xff]
      %v222 = vld [vmem:[%s165 + $0x20] sm:$0xff]
      %v223 = vld [vmem:[%s165 + $0x28] sm:$0xff]
      %v224 = vld [vmem:[%s165 + $0x30] sm:$0xff]
      %v225 = vld [vmem:[%s165 + $0x38] sm:$0xff]
      %v226 = vld [vmem:[%s165 + $0x40] sm:$0xff]
      %v227 = vld [vmem:[%s165 + $0x48] sm:$0xff]
      %v228 = vld [vmem:[%s165 + $0x50] sm:$0xff]
      %v229 = vld [vmem:[%s165 + $0x58] sm:$0xff]
      %v230 = vld [vmem:[%s165 + $0x60] sm:$0xff]
      %v231 = vld [vmem:[%s165 + $0x68] sm:$0xff]
      %v232 = vld [vmem:[%s165 + $0x70] sm:$0xff]
      %v233 = vld [vmem:[%s165 + $0x78] sm:$0xff]
      %v234 = vld [vmem:[%s165 + $0x80] sm:$0xff]
      %v235 = vld [vmem:[%s165 + $0x88] sm:$0xff]
      %v236 = vld [vmem:[%s165 + $0x90] sm:$0xff]
      %v237 = vld [vmem:[%s165 + $0x98] sm:$0xff]
      %v238 = vld [vmem:[%s165 + $0xa0] sm:$0xff]
      %v239 = vld [vmem:[%s165 + $0xa8] sm:$0xff]
      %v240 = vld [vmem:[%s165 + $0xb0] sm:$0xff]
      %v241 = vld [vmem:[%s165 + $0xb8] sm:$0xff]
      %v242 = vld [vmem:[%s165 + $0xc0] sm:$0xff]
      %v243 = vld [vmem:[%s165 + $0xc8] sm:$0xff]
      %v244 = vld [vmem:[%s165 + $0xd0] sm:$0xff]
      %v245 = vld [vmem:[%s165 + $0xd8] sm:$0xff]
      %v246 = vld [vmem:[%s165 + $0xe0] sm:$0xff]
      %v247 = vld [vmem:[%s165 + $0xe8] sm:$0xff]
      %v248 = vld [vmem:[%s165 + $0xf0] sm:$0xff]
      %v249 = vld [vmem:[%s165 + $0xf8] sm:$0xff]
      %s250 = scalar_lea.vmem [#allocation2], 24
      %251 = vst.msk [vmem:[%s250 + $0x1] sm:$0xff] %vm172, %v218
      %252 = vst.msk [vmem:[%s250 + $0x9] sm:$0xff] %vm172, %v219
      %253 = vst.msk [vmem:[%s250 + $0x19] sm:$0xff] %vm172, %v220
      %254 = vst.msk [vmem:[%s250 + $0x21] sm:$0xff] %vm172, %v221
      %255 = vst.msk [vmem:[%s250 + $0x31] sm:$0xff] %vm172, %v222
      %256 = vst.msk [vmem:[%s250 + $0x39] sm:$0xff] %vm172, %v223
      %257 = vst.msk [vmem:[%s250 + $0x49] sm:$0xff] %vm172, %v224
      %258 = vst.msk [vmem:[%s250 + $0x51] sm:$0xff] %vm172, %v225
      %259 = vst.msk [vmem:[%s250 + $0x61] sm:$0xff] %vm172, %v226
      %260 = vst.msk [vmem:[%s250 + $0x69] sm:$0xff] %vm172, %v227
      %261 = vst.msk [vmem:[%s250 + $0x79] sm:$0xff] %vm172, %v228
      %262 = vst.msk [vmem:[%s250 + $0x81] sm:$0xff] %vm172, %v229
      %263 = vst.msk [vmem:[%s250 + $0x91] sm:$0xff] %vm172, %v230
      %264 = vst.msk [vmem:[%s250 + $0x99] sm:$0xff] %vm172, %v231
      %265 = vst.msk [vmem:[%s250 + $0xa9] sm:$0xff] %vm172, %v232
      %266 = vst.msk [vmem:[%s250 + $0xb1] sm:$0xff] %vm172, %v233
      %267 = vst.msk [vmem:[%s250 + $0xc1] sm:$0xff] %vm172, %v234
      %268 = vst.msk [vmem:[%s250 + $0xc9] sm:$0xff] %vm172, %v235
      %269 = vst.msk [vmem:[%s250 + $0xd9] sm:$0xff] %vm172, %v236
      %270 = vst.msk [vmem:[%s250 + $0xe1] sm:$0xff] %vm172, %v237
      %271 = vst.msk [vmem:[%s250 + $0xf1] sm:$0xff] %vm172, %v238
      %272 = vst.msk [vmem:[%s250 + $0xf9] sm:$0xff] %vm172, %v239
      %273 = vst.msk [vmem:[%s250 + $0x109] sm:$0xff] %vm172, %v240
      %274 = vst.msk [vmem:[%s250 + $0x111] sm:$0xff] %vm172, %v241
      %275 = vst.msk [vmem:[%s250 + $0x121] sm:$0xff] %vm172, %v242
      %276 = vst.msk [vmem:[%s250 + $0x129] sm:$0xff] %vm172, %v243
      %277 = vst.msk [vmem:[%s250 + $0x139] sm:$0xff] %vm172, %v244
      %278 = vst.msk [vmem:[%s250 + $0x141] sm:$0xff] %vm172, %v245
      %279 = vst.msk [vmem:[%s250 + $0x151] sm:$0xff] %vm172, %v246
      %280 = vst.msk [vmem:[%s250 + $0x159] sm:$0xff] %vm172, %v247
      %281 = vst.msk [vmem:[%s250 + $0x169] sm:$0xff] %vm172, %v248
      %282 = vst.msk [vmem:[%s250 + $0x171] sm:$0xff] %vm172, %v249
      %v283 = vld [vmem:[#allocation2] sm:$0xff]
      %v284 = vld [vmem:[#allocation2 + $0x8] sm:$0xff]
      %v285 = vld [vmem:[#allocation2 + $0x18] sm:$0xff]
      %v286 = vld [vmem:[#allocation2 + $0x20] sm:$0xff]
      %v287 = vld [vmem:[#allocation2 + $0x30] sm:$0xff]
      %v288 = vld [vmem:[#allocation2 + $0x38] sm:$0xff]
      %v289 = vld [vmem:[#allocation2 + $0x48] sm:$0xff]
      %v290 = vld [vmem:[#allocation2 + $0x50] sm:$0xff]
      %v291 = vld [vmem:[#allocation2 + $0x60] sm:$0xff]
      %v292 = vld [vmem:[#allocation2 + $0x68] sm:$0xff]
      %v293 = vld [vmem:[#allocation2 + $0x78] sm:$0xff]
      %v294 = vld [vmem:[#allocation2 + $0x80] sm:$0xff]
      %v295 = vld [vmem:[#allocation2 + $0x90] sm:$0xff]
      %v296 = vld [vmem:[#allocation2 + $0x98] sm:$0xff]
      %v297 = vld [vmem:[#allocation2 + $0xa8] sm:$0xff]
      %v298 = vld [vmem:[#allocation2 + $0xb0] sm:$0xff]
      %v299 = vld [vmem:[#allocation2 + $0xc0] sm:$0xff]
      %v300 = vld [vmem:[#allocation2 + $0xc8] sm:$0xff]
      %v301 = vld [vmem:[#allocation2 + $0xd8] sm:$0xff]
      %v302 = vld [vmem:[#allocation2 + $0xe0] sm:$0xff]
      %v303 = vld [vmem:[#allocation2 + $0xf0] sm:$0xff]
      %v304 = vld [vmem:[#allocation2 + $0xf8] sm:$0xff]
      %v305 = vld [vmem:[#allocation2 + $0x108] sm:$0xff]
      %v306 = vld [vmem:[#allocation2 + $0x110] sm:$0xff]
      %v307 = vld [vmem:[#allocation2 + $0x120] sm:$0xff]
      %v308 = vld [vmem:[#allocation2 + $0x128] sm:$0xff]
      %v309 = vld [vmem:[#allocation2 + $0x138] sm:$0xff]
      %v310 = vld [vmem:[#allocation2 + $0x140] sm:$0xff]
      %v311 = vld [vmem:[#allocation2 + $0x150] sm:$0xff]
      %v312 = vld [vmem:[#allocation2 + $0x158] sm:$0xff]
      %v313 = vld [vmem:[#allocation2 + $0x168] sm:$0xff]
      %v314 = vld [vmem:[#allocation2 + $0x170] sm:$0xff]
      %v315 = vpack.c.bf16 %v283, %v283
      %v316 = vpack.c.bf16 %v284, %v284
      %v317 = vpack.c.bf16 %v285, %v285
      %v318 = vpack.c.bf16 %v286, %v286
      %v319 = vpack.c.bf16 %v287, %v287
      %v320 = vpack.c.bf16 %v288, %v288
      %v321 = vpack.c.bf16 %v289, %v289
      %v322 = vpack.c.bf16 %v290, %v290
      %v323 = vpack.c.bf16 %v291, %v291
      %v324 = vpack.c.bf16 %v292, %v292
      %v325 = vpack.c.bf16 %v293, %v293
      %v326 = vpack.c.bf16 %v294, %v294
      %v327 = vpack.c.bf16 %v295, %v295
      %v328 = vpack.c.bf16 %v296, %v296
      %v329 = vpack.c.bf16 %v297, %v297
      %v330 = vpack.c.bf16 %v298, %v298
      %v331 = vpack.c.bf16 %v299, %v299
      %v332 = vpack.c.bf16 %v300, %v300
      %v333 = vpack.c.bf16 %v301, %v301
      %v334 = vpack.c.bf16 %v302, %v302
      %v335 = vpack.c.bf16 %v303, %v303
      %v336 = vpack.c.bf16 %v304, %v304
      %v337 = vpack.c.bf16 %v305, %v305
      %v338 = vpack.c.bf16 %v306, %v306
      %v339 = vpack.c.bf16 %v307, %v307
      %v340 = vpack.c.bf16 %v308, %v308
      %v341 = vpack.c.bf16 %v309, %v309
      %v342 = vpack.c.bf16 %v310, %v310
      %v343 = vpack.c.bf16 %v311, %v311
      %v344 = vpack.c.bf16 %v312, %v312
      %v345 = vpack.c.bf16 %v313, %v313
      %v346 = vpack.c.bf16 %v314, %v314
      %vm347 = vcmask 27648
      %348 = vst.msk [vmem:[#allocation3] sm:$0xf] %vm347, %v315
      %349 = vst.msk [vmem:[#allocation3 + $0x4] sm:$0xf] %vm347, %v316
      %350 = vst.msk [vmem:[#allocation3 + $0x8] sm:$0xf] %vm347, %v317
      %351 = vst.msk [vmem:[#allocation3 + $0xc] sm:$0xf] %vm347, %v318
      %352 = vst.msk [vmem:[#allocation3 + $0x10] sm:$0xf] %vm347, %v319
      %353 = vst.msk [vmem:[#allocation3 + $0x14] sm:$0xf] %vm347, %v320
      %354 = vst.msk [vmem:[#allocation3 + $0x18] sm:$0xf] %vm347, %v321
      %355 = vst.msk [vmem:[#allocation3 + $0x1c] sm:$0xf] %vm347, %v322
      %356 = vst.msk [vmem:[#allocation3 + $0x20] sm:$0xf] %vm347, %v323
      %357 = vst.msk [vmem:[#allocation3 + $0x24] sm:$0xf] %vm347, %v324
      %358 = vst.msk [vmem:[#allocation3 + $0x28] sm:$0xf] %vm347, %v325
      %359 = vst.msk [vmem:[#allocation3 + $0x2c] sm:$0xf] %vm347, %v326
      %360 = vst.msk [vmem:[#allocation3 + $0x30] sm:$0xf] %vm347, %v327
      %361 = vst.msk [vmem:[#allocation3 + $0x34] sm:$0xf] %vm347, %v328
      %362 = vst.msk [vmem:[#allocation3 + $0x38] sm:$0xf] %vm347, %v329
      %363 = vst.msk [vmem:[#allocation3 + $0x3c] sm:$0xf] %vm347, %v330
      %364 = vst.msk [vmem:[#allocation3 + $0x40] sm:$0xf] %vm347, %v331
      %365 = vst.msk [vmem:[#allocation3 + $0x44] sm:$0xf] %vm347, %v332
      %366 = vst.msk [vmem:[#allocation3 + $0x48] sm:$0xf] %vm347, %v333
      %367 = vst.msk [vmem:[#allocation3 + $0x4c] sm:$0xf] %vm347, %v334
      %368 = vst.msk [vmem:[#allocation3 + $0x50] sm:$0xf] %vm347, %v335
      %369 = vst.msk [vmem:[#allocation3 + $0x54] sm:$0xf] %vm347, %v336
      %370 = vst.msk [vmem:[#allocation3 + $0x58] sm:$0xf] %vm347, %v337
      %371 = vst.msk [vmem:[#allocation3 + $0x5c] sm:$0xf] %vm347, %v338
      %372 = vst.msk [vmem:[#allocation3 + $0x60] sm:$0xf] %vm347, %v339
      %373 = vst.msk [vmem:[#allocation3 + $0x64] sm:$0xf] %vm347, %v340
      %374 = vst.msk [vmem:[#allocation3 + $0x68] sm:$0xf] %vm347, %v341
      %375 = vst.msk [vmem:[#allocation3 + $0x6c] sm:$0xf] %vm347, %v342
      %376 = vst.msk [vmem:[#allocation3 + $0x70] sm:$0xf] %vm347, %v343
      %377 = vst.msk [vmem:[#allocation3 + $0x74] sm:$0xf] %vm347, %v344
      %378 = vst.msk [vmem:[#allocation3 + $0x78] sm:$0xf] %vm347, %v345
      %379 = vst.msk [vmem:[#allocation3 + $0x7c] sm:$0xf] %vm347, %v346
      %v380 = vld [vmem:[#allocation2 + $0x1] sm:$0xff]
      %v381 = vld [vmem:[#allocation2 + $0x9] sm:$0xff]
      %v382 = vld [vmem:[#allocation2 + $0x19] sm:$0xff]
      %v383 = vld [vmem:[#allocation2 + $0x21] sm:$0xff]
      %v384 = vld [vmem:[#allocation2 + $0x31] sm:$0xff]
      %v385 = vld [vmem:[#allocation2 + $0x39] sm:$0xff]
      %v386 = vld [vmem:[#allocation2 + $0x49] sm:$0xff]
      %v387 = vld [vmem:[#allocation2 + $0x51] sm:$0xff]
      %v388 = vld [vmem:[#allocation2 + $0x61] sm:$0xff]
      %v389 = vld [vmem:[#allocation2 + $0x69] sm:$0xff]
      %v390 = vld [vmem:[#allocation2 + $0x79] sm:$0xff]
      %v391 = vld [vmem:[#allocation2 + $0x81] sm:$0xff]
      %v392 = vld [vmem:[#allocation2 + $0x91] sm:$0xff]
      %v393 = vld [vmem:[#allocation2 + $0x99] sm:$0xff]
      %v394 = vld [vmem:[#allocation2 + $0xa9] sm:$0xff]
      %v395 = vld [vmem:[#allocation2 + $0xb1] sm:$0xff]
      %v396 = vld [vmem:[#allocation2 + $0xc1] sm:$0xff]
      %v397 = vld [vmem:[#allocation2 + $0xc9] sm:$0xff]
      %v398 = vld [vmem:[#allocation2 + $0xd9] sm:$0xff]
      %v399 = vld [vmem:[#allocation2 + $0xe1] sm:$0xff]
      %v400 = vld [vmem:[#allocation2 + $0xf1] sm:$0xff]
      %v401 = vld [vmem:[#allocation2 + $0xf9] sm:$0xff]
      %v402 = vld [vmem:[#allocation2 + $0x109] sm:$0xff]
      %v403 = vld [vmem:[#allocation2 + $0x111] sm:$0xff]
      %v404 = vld [vmem:[#allocation2 + $0x121] sm:$0xff]
      %v405 = vld [vmem:[#allocation2 + $0x129] sm:$0xff]
      %v406 = vld [vmem:[#allocation2 + $0x139] sm:$0xff]
      %v407 = vld [vmem:[#allocation2 + $0x141] sm:$0xff]
      %v408 = vld [vmem:[#allocation2 + $0x151] sm:$0xff]
      %v409 = vld [vmem:[#allocation2 + $0x159] sm:$0xff]
      %v410 = vld [vmem:[#allocation2 + $0x169] sm:$0xff]
      %v411 = vld [vmem:[#allocation2 + $0x171] sm:$0xff]
      %v412 = vpack.c.bf16 %v380, %v380
      %v413 = vpack.c.bf16 %v381, %v381
      %v414 = vpack.c.bf16 %v382, %v382
      %v415 = vpack.c.bf16 %v383, %v383
      %v416 = vpack.c.bf16 %v384, %v384
      %v417 = vpack.c.bf16 %v385, %v385
      %v418 = vpack.c.bf16 %v386, %v386
      %v419 = vpack.c.bf16 %v387, %v387
      %v420 = vpack.c.bf16 %v388, %v388
      %v421 = vpack.c.bf16 %v389, %v389
      %v422 = vpack.c.bf16 %v390, %v390
      %v423 = vpack.c.bf16 %v391, %v391
      %v424 = vpack.c.bf16 %v392, %v392
      %v425 = vpack.c.bf16 %v393, %v393
      %v426 = vpack.c.bf16 %v394, %v394
      %v427 = vpack.c.bf16 %v395, %v395
      %v428 = vpack.c.bf16 %v396, %v396
      %v429 = vpack.c.bf16 %v397, %v397
      %v430 = vpack.c.bf16 %v398, %v398
      %v431 = vpack.c.bf16 %v399, %v399
      %v432 = vpack.c.bf16 %v400, %v400
      %v433 = vpack.c.bf16 %v401, %v401
      %v434 = vpack.c.bf16 %v402, %v402
      %v435 = vpack.c.bf16 %v403, %v403
      %v436 = vpack.c.bf16 %v404, %v404
      %v437 = vpack.c.bf16 %v405, %v405
      %v438 = vpack.c.bf16 %v406, %v406
      %v439 = vpack.c.bf16 %v407, %v407
      %v440 = vpack.c.bf16 %v408, %v408
      %v441 = vpack.c.bf16 %v409, %v409
      %v442 = vpack.c.bf16 %v410, %v410
      %v443 = vpack.c.bf16 %v411, %v411
      %476 = vrot.lane.b32.xlu0 %v412, 4
      %v477 = vpop.permute.xlu0 %476
      %478 = vrot.lane.b32.xlu0 %v413, 4
      %v479 = vpop.permute.xlu0 %478
      %480 = vrot.lane.b32.xlu0 %v414, 4
      %v481 = vpop.permute.xlu0 %480
      %482 = vrot.lane.b32.xlu0 %v415, 4
      %v483 = vpop.permute.xlu0 %482
      %484 = vrot.lane.b32.xlu0 %v416, 4
      %v485 = vpop.permute.xlu0 %484
      %486 = vrot.lane.b32.xlu0 %v417, 4
      %v487 = vpop.permute.xlu0 %486
      %488 = vrot.lane.b32.xlu0 %v418, 4
      %v489 = vpop.permute.xlu0 %488
      %490 = vrot.lane.b32.xlu0 %v419, 4
      %v491 = vpop.permute.xlu0 %490
      %492 = vrot.lane.b32.xlu0 %v420, 4
      %v493 = vpop.permute.xlu0 %492
      %494 = vrot.lane.b32.xlu0 %v421, 4
      %v495 = vpop.permute.xlu0 %494
      %496 = vrot.lane.b32.xlu0 %v422, 4
      %v497 = vpop.permute.xlu0 %496
      %498 = vrot.lane.b32.xlu0 %v423, 4
      %v499 = vpop.permute.xlu0 %498
      %500 = vrot.lane.b32.xlu0 %v424, 4
      %v501 = vpop.permute.xlu0 %500
      %502 = vrot.lane.b32.xlu0 %v425, 4
      %v503 = vpop.permute.xlu0 %502
      %504 = vrot.lane.b32.xlu0 %v426, 4
      %v505 = vpop.permute.xlu0 %504
      %506 = vrot.lane.b32.xlu0 %v427, 4
      %v507 = vpop.permute.xlu0 %506
      %508 = vrot.lane.b32.xlu0 %v428, 4
      %v509 = vpop.permute.xlu0 %508
      %510 = vrot.lane.b32.xlu0 %v429, 4
      %v511 = vpop.permute.xlu0 %510
      %512 = vrot.lane.b32.xlu0 %v430, 4
      %v513 = vpop.permute.xlu0 %512
      %514 = vrot.lane.b32.xlu0 %v431, 4
      %v515 = vpop.permute.xlu0 %514
      %516 = vrot.lane.b32.xlu0 %v432, 4
      %v517 = vpop.permute.xlu0 %516
      %518 = vrot.lane.b32.xlu0 %v433, 4
      %v519 = vpop.permute.xlu0 %518
      %520 = vrot.lane.b32.xlu0 %v434, 4
      %v521 = vpop.permute.xlu0 %520
      %522 = vrot.lane.b32.xlu0 %v435, 4
      %v523 = vpop.permute.xlu0 %522
      %524 = vrot.lane.b32.xlu0 %v436, 4
      %v525 = vpop.permute.xlu0 %524
      %526 = vrot.lane.b32.xlu0 %v437, 4
      %v527 = vpop.permute.xlu0 %526
      %528 = vrot.lane.b32.xlu0 %v438, 4
      %v529 = vpop.permute.xlu0 %528
      %530 = vrot.lane.b32.xlu0 %v439, 4
      %v531 = vpop.permute.xlu0 %530
      %532 = vrot.lane.b32.xlu0 %v440, 4
      %v533 = vpop.permute.xlu0 %532
      %534 = vrot.lane.b32.xlu0 %v441, 4
      %v535 = vpop.permute.xlu0 %534
      %536 = vrot.lane.b32.xlu0 %v442, 4
      %v537 = vpop.permute.xlu0 %536
      %538 = vrot.lane.b32.xlu0 %v443, 4
      %v539 = vpop.permute.xlu0 %538
      %vm572 = vcmask 60448
      %573 = vst.msk [vmem:[#allocation3] sm:$0xf] %vm572, %v477
      %574 = vst.msk [vmem:[#allocation3 + $0x4] sm:$0xf] %vm572, %v479
      %575 = vst.msk [vmem:[#allocation3 + $0x8] sm:$0xf] %vm572, %v481
      %576 = vst.msk [vmem:[#allocation3 + $0xc] sm:$0xf] %vm572, %v483
      %577 = vst.msk [vmem:[#allocation3 + $0x10] sm:$0xf] %vm572, %v485
      %578 = vst.msk [vmem:[#allocation3 + $0x14] sm:$0xf] %vm572, %v487
      %579 = vst.msk [vmem:[#allocation3 + $0x18] sm:$0xf] %vm572, %v489
      %580 = vst.msk [vmem:[#allocation3 + $0x1c] sm:$0xf] %vm572, %v491
      %581 = vst.msk [vmem:[#allocation3 + $0x20] sm:$0xf] %vm572, %v493
      %582 = vst.msk [vmem:[#allocation3 + $0x24] sm:$0xf] %vm572, %v495
      %583 = vst.msk [vmem:[#allocation3 + $0x28] sm:$0xf] %vm572, %v497
      %584 = vst.msk [vmem:[#allocation3 + $0x2c] sm:$0xf] %vm572, %v499
      %585 = vst.msk [vmem:[#allocation3 + $0x30] sm:$0xf] %vm572, %v501
      %586 = vst.msk [vmem:[#allocation3 + $0x34] sm:$0xf] %vm572, %v503
      %587 = vst.msk [vmem:[#allocation3 + $0x38] sm:$0xf] %vm572, %v505
      %588 = vst.msk [vmem:[#allocation3 + $0x3c] sm:$0xf] %vm572, %v507
      %589 = vst.msk [vmem:[#allocation3 + $0x40] sm:$0xf] %vm572, %v509
      %590 = vst.msk [vmem:[#allocation3 + $0x44] sm:$0xf] %vm572, %v511
      %591 = vst.msk [vmem:[#allocation3 + $0x48] sm:$0xf] %vm572, %v513
      %592 = vst.msk [vmem:[#allocation3 + $0x4c] sm:$0xf] %vm572, %v515
      %593 = vst.msk [vmem:[#allocation3 + $0x50] sm:$0xf] %vm572, %v517
      %594 = vst.msk [vmem:[#allocation3 + $0x54] sm:$0xf] %vm572, %v519
      %595 = vst.msk [vmem:[#allocation3 + $0x58] sm:$0xf] %vm572, %v521
      %596 = vst.msk [vmem:[#allocation3 + $0x5c] sm:$0xf] %vm572, %v523
      %597 = vst.msk [vmem:[#allocation3 + $0x60] sm:$0xf] %vm572, %v525
      %598 = vst.msk [vmem:[#allocation3 + $0x64] sm:$0xf] %vm572, %v527
      %599 = vst.msk [vmem:[#allocation3 + $0x68] sm:$0xf] %vm572, %v529
      %600 = vst.msk [vmem:[#allocation3 + $0x6c] sm:$0xf] %vm572, %v531
      %601 = vst.msk [vmem:[#allocation3 + $0x70] sm:$0xf] %vm572, %v533
      %602 = vst.msk [vmem:[#allocation3 + $0x74] sm:$0xf] %vm572, %v535
      %603 = vst.msk [vmem:[#allocation3 + $0x78] sm:$0xf] %vm572, %v537
      %604 = vst.msk [vmem:[#allocation3 + $0x7c] sm:$0xf] %vm572, %v539
      %v605 = vld [vmem:[#allocation2 + $0x2] sm:$0xff]
      %v606 = vld [vmem:[#allocation2 + $0xa] sm:$0xff]
      %v607 = vld [vmem:[#allocation2 + $0x1a] sm:$0xff]
      %v608 = vld [vmem:[#allocation2 + $0x22] sm:$0xff]
      %v609 = vld [vmem:[#allocation2 + $0x32] sm:$0xff]
      %v610 = vld [vmem:[#allocation2 + $0x3a] sm:$0xff]
      %v611 = vld [vmem:[#allocation2 + $0x4a] sm:$0xff]
      %v612 = vld [vmem:[#allocation2 + $0x52] sm:$0xff]
      %v613 = vld [vmem:[#allocation2 + $0x62] sm:$0xff]
      %v614 = vld [vmem:[#allocation2 + $0x6a] sm:$0xff]
      %v615 = vld [vmem:[#allocation2 + $0x7a] sm:$0xff]
      %v616 = vld [vmem:[#allocation2 + $0x82] sm:$0xff]
      %v617 = vld [vmem:[#allocation2 + $0x92] sm:$0xff]
      %v618 = vld [vmem:[#allocation2 + $0x9a] sm:$0xff]
      %v619 = vld [vmem:[#allocation2 + $0xaa] sm:$0xff]
      %v620 = vld [vmem:[#allocation2 + $0xb2] sm:$0xff]
      %v621 = vld [vmem:[#allocation2 + $0xc2] sm:$0xff]
      %v622 = vld [vmem:[#allocation2 + $0xca] sm:$0xff]
      %v623 = vld [vmem:[#allocation2 + $0xda] sm:$0xff]
      %v624 = vld [vmem:[#allocation2 + $0xe2] sm:$0xff]
      %v625 = vld [vmem:[#allocation2 + $0xf2] sm:$0xff]
      %v626 = vld [vmem:[#allocation2 + $0xfa] sm:$0xff]
      %v627 = vld [vmem:[#allocation2 + $0x10a] sm:$0xff]
      %v628 = vld [vmem:[#allocation2 + $0x112] sm:$0xff]
      %v629 = vld [vmem:[#allocation2 + $0x122] sm:$0xff]
      %v630 = vld [vmem:[#allocation2 + $0x12a] sm:$0xff]
      %v631 = vld [vmem:[#allocation2 + $0x13a] sm:$0xff]
      %v632 = vld [vmem:[#allocation2 + $0x142] sm:$0xff]
      %v633 = vld [vmem:[#allocation2 + $0x152] sm:$0xff]
      %v634 = vld [vmem:[#allocation2 + $0x15a] sm:$0xff]
      %v635 = vld [vmem:[#allocation2 + $0x16a] sm:$0xff]
      %v636 = vld [vmem:[#allocation2 + $0x172] sm:$0xff]
      %v637 = vpack.c.bf16 %v605, %v605
      %v638 = vpack.c.bf16 %v606, %v606
      %v639 = vpack.c.bf16 %v607, %v607
      %v640 = vpack.c.bf16 %v608, %v608
      %v641 = vpack.c.bf16 %v609, %v609
      %v642 = vpack.c.bf16 %v610, %v610
      %v643 = vpack.c.bf16 %v611, %v611
      %v644 = vpack.c.bf16 %v612, %v612
      %v645 = vpack.c.bf16 %v613, %v613
      %v646 = vpack.c.bf16 %v614, %v614
      %v647 = vpack.c.bf16 %v615, %v615
      %v648 = vpack.c.bf16 %v616, %v616
      %v649 = vpack.c.bf16 %v617, %v617
      %v650 = vpack.c.bf16 %v618, %v618
      %v651 = vpack.c.bf16 %v619, %v619
      %v652 = vpack.c.bf16 %v620, %v620
      %v653 = vpack.c.bf16 %v621, %v621
      %v654 = vpack.c.bf16 %v622, %v622
      %v655 = vpack.c.bf16 %v623, %v623
      %v656 = vpack.c.bf16 %v624, %v624
      %v657 = vpack.c.bf16 %v625, %v625
      %v658 = vpack.c.bf16 %v626, %v626
      %v659 = vpack.c.bf16 %v627, %v627
      %v660 = vpack.c.bf16 %v628, %v628
      %v661 = vpack.c.bf16 %v629, %v629
      %v662 = vpack.c.bf16 %v630, %v630
      %v663 = vpack.c.bf16 %v631, %v631
      %v664 = vpack.c.bf16 %v632, %v632
      %v665 = vpack.c.bf16 %v633, %v633
      %v666 = vpack.c.bf16 %v634, %v634
      %v667 = vpack.c.bf16 %v635, %v635
      %v668 = vpack.c.bf16 %v636, %v636
      %701 = vrot.lane.b32.xlu0 %v637, 8
      %v702 = vpop.permute.xlu0 %701
      %703 = vrot.lane.b32.xlu0 %v638, 8
      %v704 = vpop.permute.xlu0 %703
      %705 = vrot.lane.b32.xlu0 %v639, 8
      %v706 = vpop.permute.xlu0 %705
      %707 = vrot.lane.b32.xlu0 %v640, 8
      %v708 = vpop.permute.xlu0 %707
      %709 = vrot.lane.b32.xlu0 %v641, 8
      %v710 = vpop.permute.xlu0 %709
      %711 = vrot.lane.b32.xlu0 %v642, 8
      %v712 = vpop.permute.xlu0 %711
      %713 = vrot.lane.b32.xlu0 %v643, 8
      %v714 = vpop.permute.xlu0 %713
      %715 = vrot.lane.b32.xlu0 %v644, 8
      %v716 = vpop.permute.xlu0 %715
      %717 = vrot.lane.b32.xlu0 %v645, 8
      %v718 = vpop.permute.xlu0 %717
      %719 = vrot.lane.b32.xlu0 %v646, 8
      %v720 = vpop.permute.xlu0 %719
      %721 = vrot.lane.b32.xlu0 %v647, 8
      %v722 = vpop.permute.xlu0 %721
      %723 = vrot.lane.b32.xlu0 %v648, 8
      %v724 = vpop.permute.xlu0 %723
      %725 = vrot.lane.b32.xlu0 %v649, 8
      %v726 = vpop.permute.xlu0 %725
      %727 = vrot.lane.b32.xlu0 %v650, 8
      %v728 = vpop.permute.xlu0 %727
      %729 = vrot.lane.b32.xlu0 %v651, 8
      %v730 = vpop.permute.xlu0 %729
      %731 = vrot.lane.b32.xlu0 %v652, 8
      %v732 = vpop.permute.xlu0 %731
      %733 = vrot.lane.b32.xlu0 %v653, 8
      %v734 = vpop.permute.xlu0 %733
      %735 = vrot.lane.b32.xlu0 %v654, 8
      %v736 = vpop.permute.xlu0 %735
      %737 = vrot.lane.b32.xlu0 %v655, 8
      %v738 = vpop.permute.xlu0 %737
      %739 = vrot.lane.b32.xlu0 %v656, 8
      %v740 = vpop.permute.xlu0 %739
      %741 = vrot.lane.b32.xlu0 %v657, 8
      %v742 = vpop.permute.xlu0 %741
      %743 = vrot.lane.b32.xlu0 %v658, 8
      %v744 = vpop.permute.xlu0 %743
      %745 = vrot.lane.b32.xlu0 %v659, 8
      %v746 = vpop.permute.xlu0 %745
      %747 = vrot.lane.b32.xlu0 %v660, 8
      %v748 = vpop.permute.xlu0 %747
      %749 = vrot.lane.b32.xlu0 %v661, 8
      %v750 = vpop.permute.xlu0 %749
      %751 = vrot.lane.b32.xlu0 %v662, 8
      %v752 = vpop.permute.xlu0 %751
      %753 = vrot.lane.b32.xlu0 %v663, 8
      %v754 = vpop.permute.xlu0 %753
      %755 = vrot.lane.b32.xlu0 %v664, 8
      %v756 = vpop.permute.xlu0 %755
      %757 = vrot.lane.b32.xlu0 %v665, 8
      %v758 = vpop.permute.xlu0 %757
      %759 = vrot.lane.b32.xlu0 %v666, 8
      %v760 = vpop.permute.xlu0 %759
      %761 = vrot.lane.b32.xlu0 %v667, 8
      %v762 = vpop.permute.xlu0 %761
      %763 = vrot.lane.b32.xlu0 %v668, 8
      %v764 = vpop.permute.xlu0 %763
      %vm797 = vcmask 93248
      %798 = vst.msk [vmem:[#allocation3] sm:$0xf] %vm797, %v702
      %799 = vst.msk [vmem:[#allocation3 + $0x4] sm:$0xf] %vm797, %v704
      %800 = vst.msk [vmem:[#allocation3 + $0x8] sm:$0xf] %vm797, %v706
      %801 = vst.msk [vmem:[#allocation3 + $0xc] sm:$0xf] %vm797, %v708
      %802 = vst.msk [vmem:[#allocation3 + $0x10] sm:$0xf] %vm797, %v710
      %803 = vst.msk [vmem:[#allocation3 + $0x14] sm:$0xf] %vm797, %v712
      %804 = vst.msk [vmem:[#allocation3 + $0x18] sm:$0xf] %vm797, %v714
      %805 = vst.msk [vmem:[#allocation3 + $0x1c] sm:$0xf] %vm797, %v716
      %806 = vst.msk [vmem:[#allocation3 + $0x20] sm:$0xf] %vm797, %v718
      %807 = vst.msk [vmem:[#allocation3 + $0x24] sm:$0xf] %vm797, %v720
      %808 = vst.msk [vmem:[#allocation3 + $0x28] sm:$0xf] %vm797, %v722
      %809 = vst.msk [vmem:[#allocation3 + $0x2c] sm:$0xf] %vm797, %v724
      %810 = vst.msk [vmem:[#allocation3 + $0x30] sm:$0xf] %vm797, %v726
      %811 = vst.msk [vmem:[#allocation3 + $0x34] sm:$0xf] %vm797, %v728
      %812 = vst.msk [vmem:[#allocation3 + $0x38] sm:$0xf] %vm797, %v730
      %813 = vst.msk [vmem:[#allocation3 + $0x3c] sm:$0xf] %vm797, %v732
      %814 = vst.msk [vmem:[#allocation3 + $0x40] sm:$0xf] %vm797, %v734
      %815 = vst.msk [vmem:[#allocation3 + $0x44] sm:$0xf] %vm797, %v736
      %816 = vst.msk [vmem:[#allocation3 + $0x48] sm:$0xf] %vm797, %v738
      %817 = vst.msk [vmem:[#allocation3 + $0x4c] sm:$0xf] %vm797, %v740
      %818 = vst.msk [vmem:[#allocation3 + $0x50] sm:$0xf] %vm797, %v742
      %819 = vst.msk [vmem:[#allocation3 + $0x54] sm:$0xf] %vm797, %v744
      %820 = vst.msk [vmem:[#allocation3 + $0x58] sm:$0xf] %vm797, %v746
      %821 = vst.msk [vmem:[#allocation3 + $0x5c] sm:$0xf] %vm797, %v748
      %822 = vst.msk [vmem:[#allocation3 + $0x60] sm:$0xf] %vm797, %v750
      %823 = vst.msk [vmem:[#allocation3 + $0x64] sm:$0xf] %vm797, %v752
      %824 = vst.msk [vmem:[#allocation3 + $0x68] sm:$0xf] %vm797, %v754
      %825 = vst.msk [vmem:[#allocation3 + $0x6c] sm:$0xf] %vm797, %v756
      %826 = vst.msk [vmem:[#allocation3 + $0x70] sm:$0xf] %vm797, %v758
      %827 = vst.msk [vmem:[#allocation3 + $0x74] sm:$0xf] %vm797, %v760
      %828 = vst.msk [vmem:[#allocation3 + $0x78] sm:$0xf] %vm797, %v762
      %829 = vst.msk [vmem:[#allocation3 + $0x7c] sm:$0xf] %vm797, %v764
      %v830 = vld [vmem:[%s250] sm:$0xff]
      %v831 = vld [vmem:[%s250 + $0x8] sm:$0xff]
      %v832 = vld [vmem:[%s250 + $0x18] sm:$0xff]
      %v833 = vld [vmem:[%s250 + $0x20] sm:$0xff]
      %v834 = vld [vmem:[%s250 + $0x30] sm:$0xff]
      %v835 = vld [vmem:[%s250 + $0x38] sm:$0xff]
      %v836 = vld [vmem:[%s250 + $0x48] sm:$0xff]
      %v837 = vld [vmem:[%s250 + $0x50] sm:$0xff]
      %v838 = vld [vmem:[%s250 + $0x60] sm:$0xff]
      %v839 = vld [vmem:[%s250 + $0x68] sm:$0xff]
      %v840 = vld [vmem:[%s250 + $0x78] sm:$0xff]
      %v841 = vld [vmem:[%s250 + $0x80] sm:$0xff]
      %v842 = vld [vmem:[%s250 + $0x90] sm:$0xff]
      %v843 = vld [vmem:[%s250 + $0x98] sm:$0xff]
      %v844 = vld [vmem:[%s250 + $0xa8] sm:$0xff]
      %v845 = vld [vmem:[%s250 + $0xb0] sm:$0xff]
      %v846 = vld [vmem:[%s250 + $0xc0] sm:$0xff]
      %v847 = vld [vmem:[%s250 + $0xc8] sm:$0xff]
      %v848 = vld [vmem:[%s250 + $0xd8] sm:$0xff]
      %v849 = vld [vmem:[%s250 + $0xe0] sm:$0xff]
      %v850 = vld [vmem:[%s250 + $0xf0] sm:$0xff]
      %v851 = vld [vmem:[%s250 + $0xf8] sm:$0xff]
      %v852 = vld [vmem:[%s250 + $0x108] sm:$0xff]
      %v853 = vld [vmem:[%s250 + $0x110] sm:$0xff]
      %v854 = vld [vmem:[%s250 + $0x120] sm:$0xff]
      %v855 = vld [vmem:[%s250 + $0x128] sm:$0xff]
      %v856 = vld [vmem:[%s250 + $0x138] sm:$0xff]
      %v857 = vld [vmem:[%s250 + $0x140] sm:$0xff]
      %v858 = vld [vmem:[%s250 + $0x150] sm:$0xff]
      %v859 = vld [vmem:[%s250 + $0x158] sm:$0xff]
      %v860 = vld [vmem:[%s250 + $0x168] sm:$0xff]
      %v861 = vld [vmem:[%s250 + $0x170] sm:$0xff]
      %v862 = vpack.c.bf16 %v830, %v830
      %v863 = vpack.c.bf16 %v831, %v831
      %v864 = vpack.c.bf16 %v832, %v832
      %v865 = vpack.c.bf16 %v833, %v833
      %v866 = vpack.c.bf16 %v834, %v834
      %v867 = vpack.c.bf16 %v835, %v835
      %v868 = vpack.c.bf16 %v836, %v836
      %v869 = vpack.c.bf16 %v837, %v837
      %v870 = vpack.c.bf16 %v838, %v838
      %v871 = vpack.c.bf16 %v839, %v839
      %v872 = vpack.c.bf16 %v840, %v840
      %v873 = vpack.c.bf16 %v841, %v841
      %v874 = vpack.c.bf16 %v842, %v842
      %v875 = vpack.c.bf16 %v843, %v843
      %v876 = vpack.c.bf16 %v844, %v844
      %v877 = vpack.c.bf16 %v845, %v845
      %v878 = vpack.c.bf16 %v846, %v846
      %v879 = vpack.c.bf16 %v847, %v847
      %v880 = vpack.c.bf16 %v848, %v848
      %v881 = vpack.c.bf16 %v849, %v849
      %v882 = vpack.c.bf16 %v850, %v850
      %v883 = vpack.c.bf16 %v851, %v851
      %v884 = vpack.c.bf16 %v852, %v852
      %v885 = vpack.c.bf16 %v853, %v853
      %v886 = vpack.c.bf16 %v854, %v854
      %v887 = vpack.c.bf16 %v855, %v855
      %v888 = vpack.c.bf16 %v856, %v856
      %v889 = vpack.c.bf16 %v857, %v857
      %v890 = vpack.c.bf16 %v858, %v858
      %v891 = vpack.c.bf16 %v859, %v859
      %v892 = vpack.c.bf16 %v860, %v860
      %v893 = vpack.c.bf16 %v861, %v861
      %926 = vrot.lane.b32.xlu0 %v862, 12
      %v927 = vpop.permute.xlu0 %926
      %928 = vrot.lane.b32.xlu0 %v863, 12
      %v929 = vpop.permute.xlu0 %928
      %930 = vrot.lane.b32.xlu0 %v864, 12
      %v931 = vpop.permute.xlu0 %930
      %932 = vrot.lane.b32.xlu0 %v865, 12
      %v933 = vpop.permute.xlu0 %932
      %934 = vrot.lane.b32.xlu0 %v866, 12
      %v935 = vpop.permute.xlu0 %934
      %936 = vrot.lane.b32.xlu0 %v867, 12
      %v937 = vpop.permute.xlu0 %936
      %938 = vrot.lane.b32.xlu0 %v868, 12
      %v939 = vpop.permute.xlu0 %938
      %940 = vrot.lane.b32.xlu0 %v869, 12
      %v941 = vpop.permute.xlu0 %940
      %942 = vrot.lane.b32.xlu0 %v870, 12
      %v943 = vpop.permute.xlu0 %942
      %944 = vrot.lane.b32.xlu0 %v871, 12
      %v945 = vpop.permute.xlu0 %944
      %946 = vrot.lane.b32.xlu0 %v872, 12
      %v947 = vpop.permute.xlu0 %946
      %948 = vrot.lane.b32.xlu0 %v873, 12
      %v949 = vpop.permute.xlu0 %948
      %950 = vrot.lane.b32.xlu0 %v874, 12
      %v951 = vpop.permute.xlu0 %950
      %952 = vrot.lane.b32.xlu0 %v875, 12
      %v953 = vpop.permute.xlu0 %952
      %954 = vrot.lane.b32.xlu0 %v876, 12
      %v955 = vpop.permute.xlu0 %954
      %956 = vrot.lane.b32.xlu0 %v877, 12
      %v957 = vpop.permute.xlu0 %956
      %958 = vrot.lane.b32.xlu0 %v878, 12
      %v959 = vpop.permute.xlu0 %958
      %960 = vrot.lane.b32.xlu0 %v879, 12
      %v961 = vpop.permute.xlu0 %960
      %962 = vrot.lane.b32.xlu0 %v880, 12
      %v963 = vpop.permute.xlu0 %962
      %964 = vrot.lane.b32.xlu0 %v881, 12
      %v965 = vpop.permute.xlu0 %964
      %966 = vrot.lane.b32.xlu0 %v882, 12
      %v967 = vpop.permute.xlu0 %966
      %968 = vrot.lane.b32.xlu0 %v883, 12
      %v969 = vpop.permute.xlu0 %968
      %970 = vrot.lane.b32.xlu0 %v884, 12
      %v971 = vpop.permute.xlu0 %970
      %972 = vrot.lane.b32.xlu0 %v885, 12
      %v973 = vpop.permute.xlu0 %972
      %974 = vrot.lane.b32.xlu0 %v886, 12
      %v975 = vpop.permute.xlu0 %974
      %976 = vrot.lane.b32.xlu0 %v887, 12
      %v977 = vpop.permute.xlu0 %976
      %978 = vrot.lane.b32.xlu0 %v888, 12
      %v979 = vpop.permute.xlu0 %978
      %980 = vrot.lane.b32.xlu0 %v889, 12
      %v981 = vpop.permute.xlu0 %980
      %982 = vrot.lane.b32.xlu0 %v890, 12
      %v983 = vpop.permute.xlu0 %982
      %984 = vrot.lane.b32.xlu0 %v891, 12
      %v985 = vpop.permute.xlu0 %984
      %986 = vrot.lane.b32.xlu0 %v892, 12
      %v987 = vpop.permute.xlu0 %986
      %988 = vrot.lane.b32.xlu0 %v893, 12
      %v989 = vpop.permute.xlu0 %988
      %vm1022 = vcmask 126048
      %1023 = vst.msk [vmem:[#allocation3] sm:$0xf] %vm1022, %v927
      %1024 = vst.msk [vmem:[#allocation3 + $0x4] sm:$0xf] %vm1022, %v929
      %1025 = vst.msk [vmem:[#allocation3 + $0x8] sm:$0xf] %vm1022, %v931
      %1026 = vst.msk [vmem:[#allocation3 + $0xc] sm:$0xf] %vm1022, %v933
      %1027 = vst.msk [vmem:[#allocation3 + $0x10] sm:$0xf] %vm1022, %v935
      %1028 = vst.msk [vmem:[#allocation3 + $0x14] sm:$0xf] %vm1022, %v937
      %1029 = vst.msk [vmem:[#allocation3 + $0x18] sm:$0xf] %vm1022, %v939
      %1030 = vst.msk [vmem:[#allocation3 + $0x1c] sm:$0xf] %vm1022, %v941
      %1031 = vst.msk [vmem:[#allocation3 + $0x20] sm:$0xf] %vm1022, %v943
      %1032 = vst.msk [vmem:[#allocation3 + $0x24] sm:$0xf] %vm1022, %v945
      %1033 = vst.msk [vmem:[#allocation3 + $0x28] sm:$0xf] %vm1022, %v947
      %1034 = vst.msk [vmem:[#allocation3 + $0x2c] sm:$0xf] %vm1022, %v949
      %1035 = vst.msk [vmem:[#allocation3 + $0x30] sm:$0xf] %vm1022, %v951
      %1036 = vst.msk [vmem:[#allocation3 + $0x34] sm:$0xf] %vm1022, %v953
      %1037 = vst.msk [vmem:[#allocation3 + $0x38] sm:$0xf] %vm1022, %v955
      %1038 = vst.msk [vmem:[#allocation3 + $0x3c] sm:$0xf] %vm1022, %v957
      %1039 = vst.msk [vmem:[#allocation3 + $0x40] sm:$0xf] %vm1022, %v959
      %1040 = vst.msk [vmem:[#allocation3 + $0x44] sm:$0xf] %vm1022, %v961
      %1041 = vst.msk [vmem:[#allocation3 + $0x48] sm:$0xf] %vm1022, %v963
      %1042 = vst.msk [vmem:[#allocation3 + $0x4c] sm:$0xf] %vm1022, %v965
      %1043 = vst.msk [vmem:[#allocation3 + $0x50] sm:$0xf] %vm1022, %v967
      %1044 = vst.msk [vmem:[#allocation3 + $0x54] sm:$0xf] %vm1022, %v969
      %1045 = vst.msk [vmem:[#allocation3 + $0x58] sm:$0xf] %vm1022, %v971
      %1046 = vst.msk [vmem:[#allocation3 + $0x5c] sm:$0xf] %vm1022, %v973
      %1047 = vst.msk [vmem:[#allocation3 + $0x60] sm:$0xf] %vm1022, %v975
      %1048 = vst.msk [vmem:[#allocation3 + $0x64] sm:$0xf] %vm1022, %v977
      %1049 = vst.msk [vmem:[#allocation3 + $0x68] sm:$0xf] %vm1022, %v979
      %1050 = vst.msk [vmem:[#allocation3 + $0x6c] sm:$0xf] %vm1022, %v981
      %1051 = vst.msk [vmem:[#allocation3 + $0x70] sm:$0xf] %vm1022, %v983
      %1052 = vst.msk [vmem:[#allocation3 + $0x74] sm:$0xf] %vm1022, %v985
      %1053 = vst.msk [vmem:[#allocation3 + $0x78] sm:$0xf] %vm1022, %v987
      %1054 = vst.msk [vmem:[#allocation3 + $0x7c] sm:$0xf] %vm1022, %v989
      %v1055 = vld [vmem:[%s250 + $0x1] sm:$0xff]
      %v1056 = vld [vmem:[%s250 + $0x9] sm:$0xff]
      %v1057 = vld [vmem:[%s250 + $0x19] sm:$0xff]
      %v1058 = vld [vmem:[%s250 + $0x21] sm:$0xff]
      %v1059 = vld [vmem:[%s250 + $0x31] sm:$0xff]
      %v1060 = vld [vmem:[%s250 + $0x39] sm:$0xff]
      %v1061 = vld [vmem:[%s250 + $0x49] sm:$0xff]
      %v1062 = vld [vmem:[%s250 + $0x51] sm:$0xff]
      %v1063 = vld [vmem:[%s250 + $0x61] sm:$0xff]
      %v1064 = vld [vmem:[%s250 + $0x69] sm:$0xff]
      %v1065 = vld [vmem:[%s250 + $0x79] sm:$0xff]
      %v1066 = vld [vmem:[%s250 + $0x81] sm:$0xff]
      %v1067 = vld [vmem:[%s250 + $0x91] sm:$0xff]
      %v1068 = vld [vmem:[%s250 + $0x99] sm:$0xff]
      %v1069 = vld [vmem:[%s250 + $0xa9] sm:$0xff]
      %v1070 = vld [vmem:[%s250 + $0xb1] sm:$0xff]
      %v1071 = vld [vmem:[%s250 + $0xc1] sm:$0xff]
      %v1072 = vld [vmem:[%s250 + $0xc9] sm:$0xff]
      %v1073 = vld [vmem:[%s250 + $0xd9] sm:$0xff]
      %v1074 = vld [vmem:[%s250 + $0xe1] sm:$0xff]
      %v1075 = vld [vmem:[%s250 + $0xf1] sm:$0xff]
      %v1076 = vld [vmem:[%s250 + $0xf9] sm:$0xff]
      %v1077 = vld [vmem:[%s250 + $0x109] sm:$0xff]
      %v1078 = vld [vmem:[%s250 + $0x111] sm:$0xff]
      %v1079 = vld [vmem:[%s250 + $0x121] sm:$0xff]
      %v1080 = vld [vmem:[%s250 + $0x129] sm:$0xff]
      %v1081 = vld [vmem:[%s250 + $0x139] sm:$0xff]
      %v1082 = vld [vmem:[%s250 + $0x141] sm:$0xff]
      %v1083 = vld [vmem:[%s250 + $0x151] sm:$0xff]
      %v1084 = vld [vmem:[%s250 + $0x159] sm:$0xff]
      %v1085 = vld [vmem:[%s250 + $0x169] sm:$0xff]
      %v1086 = vld [vmem:[%s250 + $0x171] sm:$0xff]
      %v1087 = vpack.c.bf16 %v1055, %v1055
      %v1088 = vpack.c.bf16 %v1056, %v1056
      %v1089 = vpack.c.bf16 %v1057, %v1057
      %v1090 = vpack.c.bf16 %v1058, %v1058
      %v1091 = vpack.c.bf16 %v1059, %v1059
      %v1092 = vpack.c.bf16 %v1060, %v1060
      %v1093 = vpack.c.bf16 %v1061, %v1061
      %v1094 = vpack.c.bf16 %v1062, %v1062
      %v1095 = vpack.c.bf16 %v1063, %v1063
      %v1096 = vpack.c.bf16 %v1064, %v1064
      %v1097 = vpack.c.bf16 %v1065, %v1065
      %v1098 = vpack.c.bf16 %v1066, %v1066
      %v1099 = vpack.c.bf16 %v1067, %v1067
      %v1100 = vpack.c.bf16 %v1068, %v1068
      %v1101 = vpack.c.bf16 %v1069, %v1069
      %v1102 = vpack.c.bf16 %v1070, %v1070
      %v1103 = vpack.c.bf16 %v1071, %v1071
      %v1104 = vpack.c.bf16 %v1072, %v1072
      %v1105 = vpack.c.bf16 %v1073, %v1073
      %v1106 = vpack.c.bf16 %v1074, %v1074
      %v1107 = vpack.c.bf16 %v1075, %v1075
      %v1108 = vpack.c.bf16 %v1076, %v1076
      %v1109 = vpack.c.bf16 %v1077, %v1077
      %v1110 = vpack.c.bf16 %v1078, %v1078
      %v1111 = vpack.c.bf16 %v1079, %v1079
      %v1112 = vpack.c.bf16 %v1080, %v1080
      %v1113 = vpack.c.bf16 %v1081, %v1081
      %v1114 = vpack.c.bf16 %v1082, %v1082
      %v1115 = vpack.c.bf16 %v1083, %v1083
      %v1116 = vpack.c.bf16 %v1084, %v1084
      %v1117 = vpack.c.bf16 %v1085, %v1085
      %v1118 = vpack.c.bf16 %v1086, %v1086
      %1151 = vrot.lane.b32.xlu0 %v1087, 16
      %v1152 = vpop.permute.xlu0 %1151
      %1153 = vrot.lane.b32.xlu0 %v1088, 16
      %v1154 = vpop.permute.xlu0 %1153
      %1155 = vrot.lane.b32.xlu0 %v1089, 16
      %v1156 = vpop.permute.xlu0 %1155
      %1157 = vrot.lane.b32.xlu0 %v1090, 16
      %v1158 = vpop.permute.xlu0 %1157
      %1159 = vrot.lane.b32.xlu0 %v1091, 16
      %v1160 = vpop.permute.xlu0 %1159
      %1161 = vrot.lane.b32.xlu0 %v1092, 16
      %v1162 = vpop.permute.xlu0 %1161
      %1163 = vrot.lane.b32.xlu0 %v1093, 16
      %v1164 = vpop.permute.xlu0 %1163
      %1165 = vrot.lane.b32.xlu0 %v1094, 16
      %v1166 = vpop.permute.xlu0 %1165
      %1167 = vrot.lane.b32.xlu0 %v1095, 16
      %v1168 = vpop.permute.xlu0 %1167
      %1169 = vrot.lane.b32.xlu0 %v1096, 16
      %v1170 = vpop.permute.xlu0 %1169
      %1171 = vrot.lane.b32.xlu0 %v1097, 16
      %v1172 = vpop.permute.xlu0 %1171
      %1173 = vrot.lane.b32.xlu0 %v1098, 16
      %v1174 = vpop.permute.xlu0 %1173
      %1175 = vrot.lane.b32.xlu0 %v1099, 16
      %v1176 = vpop.permute.xlu0 %1175
      %1177 = vrot.lane.b32.xlu0 %v1100, 16
      %v1178 = vpop.permute.xlu0 %1177
      %1179 = vrot.lane.b32.xlu0 %v1101, 16
      %v1180 = vpop.permute.xlu0 %1179
      %1181 = vrot.lane.b32.xlu0 %v1102, 16
      %v1182 = vpop.permute.xlu0 %1181
      %1183 = vrot.lane.b32.xlu0 %v1103, 16
      %v1184 = vpop.permute.xlu0 %1183
      %1185 = vrot.lane.b32.xlu0 %v1104, 16
      %v1186 = vpop.permute.xlu0 %1185
      %1187 = vrot.lane.b32.xlu0 %v1105, 16
      %v1188 = vpop.permute.xlu0 %1187
      %1189 = vrot.lane.b32.xlu0 %v1106, 16
      %v1190 = vpop.permute.xlu0 %1189
      %1191 = vrot.lane.b32.xlu0 %v1107, 16
      %v1192 = vpop.permute.xlu0 %1191
      %1193 = vrot.lane.b32.xlu0 %v1108, 16
      %v1194 = vpop.permute.xlu0 %1193
      %1195 = vrot.lane.b32.xlu0 %v1109, 16
      %v1196 = vpop.permute.xlu0 %1195
      %1197 = vrot.lane.b32.xlu0 %v1110, 16
      %v1198 = vpop.permute.xlu0 %1197
      %1199 = vrot.lane.b32.xlu0 %v1111, 16
      %v1200 = vpop.permute.xlu0 %1199
      %1201 = vrot.lane.b32.xlu0 %v1112, 16
      %v1202 = vpop.permute.xlu0 %1201
      %1203 = vrot.lane.b32.xlu0 %v1113, 16
      %v1204 = vpop.permute.xlu0 %1203
      %1205 = vrot.lane.b32.xlu0 %v1114, 16
      %v1206 = vpop.permute.xlu0 %1205
      %1207 = vrot.lane.b32.xlu0 %v1115, 16
      %v1208 = vpop.permute.xlu0 %1207
      %1209 = vrot.lane.b32.xlu0 %v1116, 16
      %v1210 = vpop.permute.xlu0 %1209
      %1211 = vrot.lane.b32.xlu0 %v1117, 16
      %v1212 = vpop.permute.xlu0 %1211
      %1213 = vrot.lane.b32.xlu0 %v1118, 16
      %v1214 = vpop.permute.xlu0 %1213
      %vm1247 = vcmask 158848
      %1248 = vst.msk [vmem:[#allocation3] sm:$0xf] %vm1247, %v1152
      %1249 = vst.msk [vmem:[#allocation3 + $0x4] sm:$0xf] %vm1247, %v1154
      %1250 = vst.msk [vmem:[#allocation3 + $0x8] sm:$0xf] %vm1247, %v1156
      %1251 = vst.msk [vmem:[#allocation3 + $0xc] sm:$0xf] %vm1247, %v1158
      %1252 = vst.msk [vmem:[#allocation3 + $0x10] sm:$0xf] %vm1247, %v1160
      %1253 = vst.msk [vmem:[#allocation3 + $0x14] sm:$0xf] %vm1247, %v1162
      %1254 = vst.msk [vmem:[#allocation3 + $0x18] sm:$0xf] %vm1247, %v1164
      %1255 = vst.msk [vmem:[#allocation3 + $0x1c] sm:$0xf] %vm1247, %v1166
      %1256 = vst.msk [vmem:[#allocation3 + $0x20] sm:$0xf] %vm1247, %v1168
      %1257 = vst.msk [vmem:[#allocation3 + $0x24] sm:$0xf] %vm1247, %v1170
      %1258 = vst.msk [vmem:[#allocation3 + $0x28] sm:$0xf] %vm1247, %v1172
      %1259 = vst.msk [vmem:[#allocation3 + $0x2c] sm:$0xf] %vm1247, %v1174
      %1260 = vst.msk [vmem:[#allocation3 + $0x30] sm:$0xf] %vm1247, %v1176
      %1261 = vst.msk [vmem:[#allocation3 + $0x34] sm:$0xf] %vm1247, %v1178
      %1262 = vst.msk [vmem:[#allocation3 + $0x38] sm:$0xf] %vm1247, %v1180
      %1263 = vst.msk [vmem:[#allocation3 + $0x3c] sm:$0xf] %vm1247, %v1182
      %1264 = vst.msk [vmem:[#allocation3 + $0x40] sm:$0xf] %vm1247, %v1184
      %1265 = vst.msk [vmem:[#allocation3 + $0x44] sm:$0xf] %vm1247, %v1186
      %1266 = vst.msk [vmem:[#allocation3 + $0x48] sm:$0xf] %vm1247, %v1188
      %1267 = vst.msk [vmem:[#allocation3 + $0x4c] sm:$0xf] %vm1247, %v1190
      %1268 = vst.msk [vmem:[#allocation3 + $0x50] sm:$0xf] %vm1247, %v1192
      %1269 = vst.msk [vmem:[#allocation3 + $0x54] sm:$0xf] %vm1247, %v1194
      %1270 = vst.msk [vmem:[#allocation3 + $0x58] sm:$0xf] %vm1247, %v1196
      %1271 = vst.msk [vmem:[#allocation3 + $0x5c] sm:$0xf] %vm1247, %v1198
      %1272 = vst.msk [vmem:[#allocation3 + $0x60] sm:$0xf] %vm1247, %v1200
      %1273 = vst.msk [vmem:[#allocation3 + $0x64] sm:$0xf] %vm1247, %v1202
      %1274 = vst.msk [vmem:[#allocation3 + $0x68] sm:$0xf] %vm1247, %v1204
      %1275 = vst.msk [vmem:[#allocation3 + $0x6c] sm:$0xf] %vm1247, %v1206
      %1276 = vst.msk [vmem:[#allocation3 + $0x70] sm:$0xf] %vm1247, %v1208
      %1277 = vst.msk [vmem:[#allocation3 + $0x74] sm:$0xf] %vm1247, %v1210
      %1278 = vst.msk [vmem:[#allocation3 + $0x78] sm:$0xf] %vm1247, %v1212
      %1279 = vst.msk [vmem:[#allocation3 + $0x7c] sm:$0xf] %vm1247, %v1214
      %v1280 = vld [vmem:[%s250 + $0x2] sm:$0xff]
      %v1281 = vld [vmem:[%s250 + $0xa] sm:$0xff]
      %v1282 = vld [vmem:[%s250 + $0x1a] sm:$0xff]
      %v1283 = vld [vmem:[%s250 + $0x22] sm:$0xff]
      %v1284 = vld [vmem:[%s250 + $0x32] sm:$0xff]
      %v1285 = vld [vmem:[%s250 + $0x3a] sm:$0xff]
      %v1286 = vld [vmem:[%s250 + $0x4a] sm:$0xff]
      %v1287 = vld [vmem:[%s250 + $0x52] sm:$0xff]
      %v1288 = vld [vmem:[%s250 + $0x62] sm:$0xff]
      %v1289 = vld [vmem:[%s250 + $0x6a] sm:$0xff]
      %v1290 = vld [vmem:[%s250 + $0x7a] sm:$0xff]
      %v1291 = vld [vmem:[%s250 + $0x82] sm:$0xff]
      %v1292 = vld [vmem:[%s250 + $0x92] sm:$0xff]
      %v1293 = vld [vmem:[%s250 + $0x9a] sm:$0xff]
      %v1294 = vld [vmem:[%s250 + $0xaa] sm:$0xff]
      %v1295 = vld [vmem:[%s250 + $0xb2] sm:$0xff]
      %v1296 = vld [vmem:[%s250 + $0xc2] sm:$0xff]
      %v1297 = vld [vmem:[%s250 + $0xca] sm:$0xff]
      %v1298 = vld [vmem:[%s250 + $0xda] sm:$0xff]
      %v1299 = vld [vmem:[%s250 + $0xe2] sm:$0xff]
      %v1300 = vld [vmem:[%s250 + $0xf2] sm:$0xff]
      %v1301 = vld [vmem:[%s250 + $0xfa] sm:$0xff]
      %v1302 = vld [vmem:[%s250 + $0x10a] sm:$0xff]
      %v1303 = vld [vmem:[%s250 + $0x112] sm:$0xff]
      %v1304 = vld [vmem:[%s250 + $0x122] sm:$0xff]
      %v1305 = vld [vmem:[%s250 + $0x12a] sm:$0xff]
      %v1306 = vld [vmem:[%s250 + $0x13a] sm:$0xff]
      %v1307 = vld [vmem:[%s250 + $0x142] sm:$0xff]
      %v1308 = vld [vmem:[%s250 + $0x152] sm:$0xff]
      %v1309 = vld [vmem:[%s250 + $0x15a] sm:$0xff]
      %v1310 = vld [vmem:[%s250 + $0x16a] sm:$0xff]
      %v1311 = vld [vmem:[%s250 + $0x172] sm:$0xff]
      %v1312 = vpack.c.bf16 %v1280, %v1280
      %v1313 = vpack.c.bf16 %v1281, %v1281
      %v1314 = vpack.c.bf16 %v1282, %v1282
      %v1315 = vpack.c.bf16 %v1283, %v1283
      %v1316 = vpack.c.bf16 %v1284, %v1284
      %v1317 = vpack.c.bf16 %v1285, %v1285
      %v1318 = vpack.c.bf16 %v1286, %v1286
      %v1319 = vpack.c.bf16 %v1287, %v1287
      %v1320 = vpack.c.bf16 %v1288, %v1288
      %v1321 = vpack.c.bf16 %v1289, %v1289
      %v1322 = vpack.c.bf16 %v1290, %v1290
      %v1323 = vpack.c.bf16 %v1291, %v1291
      %v1324 = vpack.c.bf16 %v1292, %v1292
      %v1325 = vpack.c.bf16 %v1293, %v1293
      %v1326 = vpack.c.bf16 %v1294, %v1294
      %v1327 = vpack.c.bf16 %v1295, %v1295
      %v1328 = vpack.c.bf16 %v1296, %v1296
      %v1329 = vpack.c.bf16 %v1297, %v1297
      %v1330 = vpack.c.bf16 %v1298, %v1298
      %v1331 = vpack.c.bf16 %v1299, %v1299
      %v1332 = vpack.c.bf16 %v1300, %v1300
      %v1333 = vpack.c.bf16 %v1301, %v1301
      %v1334 = vpack.c.bf16 %v1302, %v1302
      %v1335 = vpack.c.bf16 %v1303, %v1303
      %v1336 = vpack.c.bf16 %v1304, %v1304
      %v1337 = vpack.c.bf16 %v1305, %v1305
      %v1338 = vpack.c.bf16 %v1306, %v1306
      %v1339 = vpack.c.bf16 %v1307, %v1307
      %v1340 = vpack.c.bf16 %v1308, %v1308
      %v1341 = vpack.c.bf16 %v1309, %v1309
      %v1342 = vpack.c.bf16 %v1310, %v1310
      %v1343 = vpack.c.bf16 %v1311, %v1311
      %1376 = vrot.lane.b32.xlu0 %v1312, 20
      %v1377 = vpop.permute.xlu0 %1376
      %1378 = vrot.lane.b32.xlu0 %v1313, 20
      %v1379 = vpop.permute.xlu0 %1378
      %1380 = vrot.lane.b32.xlu0 %v1314, 20
      %v1381 = vpop.permute.xlu0 %1380
      %1382 = vrot.lane.b32.xlu0 %v1315, 20
      %v1383 = vpop.permute.xlu0 %1382
      %1384 = vrot.lane.b32.xlu0 %v1316, 20
      %v1385 = vpop.permute.xlu0 %1384
      %1386 = vrot.lane.b32.xlu0 %v1317, 20
      %v1387 = vpop.permute.xlu0 %1386
      %1388 = vrot.lane.b32.xlu0 %v1318, 20
      %v1389 = vpop.permute.xlu0 %1388
      %1390 = vrot.lane.b32.xlu0 %v1319, 20
      %v1391 = vpop.permute.xlu0 %1390
      %1392 = vrot.lane.b32.xlu0 %v1320, 20
      %v1393 = vpop.permute.xlu0 %1392
      %1394 = vrot.lane.b32.xlu0 %v1321, 20
      %v1395 = vpop.permute.xlu0 %1394
      %1396 = vrot.lane.b32.xlu0 %v1322, 20
      %v1397 = vpop.permute.xlu0 %1396
      %1398 = vrot.lane.b32.xlu0 %v1323, 20
      %v1399 = vpop.permute.xlu0 %1398
      %1400 = vrot.lane.b32.xlu0 %v1324, 20
      %v1401 = vpop.permute.xlu0 %1400
      %1402 = vrot.lane.b32.xlu0 %v1325, 20
      %v1403 = vpop.permute.xlu0 %1402
      %1404 = vrot.lane.b32.xlu0 %v1326, 20
      %v1405 = vpop.permute.xlu0 %1404
      %1406 = vrot.lane.b32.xlu0 %v1327, 20
      %v1407 = vpop.permute.xlu0 %1406
      %1408 = vrot.lane.b32.xlu0 %v1328, 20
      %v1409 = vpop.permute.xlu0 %1408
      %1410 = vrot.lane.b32.xlu0 %v1329, 20
      %v1411 = vpop.permute.xlu0 %1410
      %1412 = vrot.lane.b32.xlu0 %v1330, 20
      %v1413 = vpop.permute.xlu0 %1412
      %1414 = vrot.lane.b32.xlu0 %v1331, 20
      %v1415 = vpop.permute.xlu0 %1414
      %1416 = vrot.lane.b32.xlu0 %v1332, 20
      %v1417 = vpop.permute.xlu0 %1416
      %1418 = vrot.lane.b32.xlu0 %v1333, 20
      %v1419 = vpop.permute.xlu0 %1418
      %1420 = vrot.lane.b32.xlu0 %v1334, 20
      %v1421 = vpop.permute.xlu0 %1420
      %1422 = vrot.lane.b32.xlu0 %v1335, 20
      %v1423 = vpop.permute.xlu0 %1422
      %1424 = vrot.lane.b32.xlu0 %v1336, 20
      %v1425 = vpop.permute.xlu0 %1424
      %1426 = vrot.lane.b32.xlu0 %v1337, 20
      %v1427 = vpop.permute.xlu0 %1426
      %1428 = vrot.lane.b32.xlu0 %v1338, 20
      %v1429 = vpop.permute.xlu0 %1428
      %1430 = vrot.lane.b32.xlu0 %v1339, 20
      %v1431 = vpop.permute.xlu0 %1430
      %1432 = vrot.lane.b32.xlu0 %v1340, 20
      %v1433 = vpop.permute.xlu0 %1432
      %1434 = vrot.lane.b32.xlu0 %v1341, 20
      %v1435 = vpop.permute.xlu0 %1434
      %1436 = vrot.lane.b32.xlu0 %v1342, 20
      %v1437 = vpop.permute.xlu0 %1436
      %1438 = vrot.lane.b32.xlu0 %v1343, 20
      %v1439 = vpop.permute.xlu0 %1438
      %vm1472 = vcmask 191648
      %1473 = vst.msk [vmem:[#allocation3] sm:$0xf] %vm1472, %v1377
      %1474 = vst.msk [vmem:[#allocation3 + $0x4] sm:$0xf] %vm1472, %v1379
      %1475 = vst.msk [vmem:[#allocation3 + $0x8] sm:$0xf] %vm1472, %v1381
      %1476 = vst.msk [vmem:[#allocation3 + $0xc] sm:$0xf] %vm1472, %v1383
      %1477 = vst.msk [vmem:[#allocation3 + $0x10] sm:$0xf] %vm1472, %v1385
      %1478 = vst.msk [vmem:[#allocation3 + $0x14] sm:$0xf] %vm1472, %v1387
      %1479 = vst.msk [vmem:[#allocation3 + $0x18] sm:$0xf] %vm1472, %v1389
      %1480 = vst.msk [vmem:[#allocation3 + $0x1c] sm:$0xf] %vm1472, %v1391
      %1481 = vst.msk [vmem:[#allocation3 + $0x20] sm:$0xf] %vm1472, %v1393
      %1482 = vst.msk [vmem:[#allocation3 + $0x24] sm:$0xf] %vm1472, %v1395
      %1483 = vst.msk [vmem:[#allocation3 + $0x28] sm:$0xf] %vm1472, %v1397
      %1484 = vst.msk [vmem:[#allocation3 + $0x2c] sm:$0xf] %vm1472, %v1399
      %1485 = vst.msk [vmem:[#allocation3 + $0x30] sm:$0xf] %vm1472, %v1401
      %1486 = vst.msk [vmem:[#allocation3 + $0x34] sm:$0xf] %vm1472, %v1403
      %1487 = vst.msk [vmem:[#allocation3 + $0x38] sm:$0xf] %vm1472, %v1405
      %1488 = vst.msk [vmem:[#allocation3 + $0x3c] sm:$0xf] %vm1472, %v1407
      %1489 = vst.msk [vmem:[#allocation3 + $0x40] sm:$0xf] %vm1472, %v1409
      %1490 = vst.msk [vmem:[#allocation3 + $0x44] sm:$0xf] %vm1472, %v1411
      %1491 = vst.msk [vmem:[#allocation3 + $0x48] sm:$0xf] %vm1472, %v1413
      %1492 = vst.msk [vmem:[#allocation3 + $0x4c] sm:$0xf] %vm1472, %v1415
      %1493 = vst.msk [vmem:[#allocation3 + $0x50] sm:$0xf] %vm1472, %v1417
      %1494 = vst.msk [vmem:[#allocation3 + $0x54] sm:$0xf] %vm1472, %v1419
      %1495 = vst.msk [vmem:[#allocation3 + $0x58] sm:$0xf] %vm1472, %v1421
      %1496 = vst.msk [vmem:[#allocation3 + $0x5c] sm:$0xf] %vm1472, %v1423
      %1497 = vst.msk [vmem:[#allocation3 + $0x60] sm:$0xf] %vm1472, %v1425
      %1498 = vst.msk [vmem:[#allocation3 + $0x64] sm:$0xf] %vm1472, %v1427
      %1499 = vst.msk [vmem:[#allocation3 + $0x68] sm:$0xf] %vm1472, %v1429
      %1500 = vst.msk [vmem:[#allocation3 + $0x6c] sm:$0xf] %vm1472, %v1431
      %1501 = vst.msk [vmem:[#allocation3 + $0x70] sm:$0xf] %vm1472, %v1433
      %1502 = vst.msk [vmem:[#allocation3 + $0x74] sm:$0xf] %vm1472, %v1435
      %1503 = vst.msk [vmem:[#allocation3 + $0x78] sm:$0xf] %vm1472, %v1437
      %1504 = vst.msk [vmem:[#allocation3 + $0x7c] sm:$0xf] %vm1472, %v1439
      %s1505 = scalar_lea.vmem [#allocation2], 48
      %v1506 = vld [vmem:[%s1505] sm:$0xff]
      %v1507 = vld [vmem:[%s1505 + $0x8] sm:$0xff]
      %v1508 = vld [vmem:[%s1505 + $0x18] sm:$0xff]
      %v1509 = vld [vmem:[%s1505 + $0x20] sm:$0xff]
      %v1510 = vld [vmem:[%s1505 + $0x30] sm:$0xff]
      %v1511 = vld [vmem:[%s1505 + $0x38] sm:$0xff]
      %v1512 = vld [vmem:[%s1505 + $0x48] sm:$0xff]
      %v1513 = vld [vmem:[%s1505 + $0x50] sm:$0xff]
      %v1514 = vld [vmem:[%s1505 + $0x60] sm:$0xff]
      %v1515 = vld [vmem:[%s1505 + $0x68] sm:$0xff]
      %v1516 = vld [vmem:[%s1505 + $0x78] sm:$0xff]
      %v1517 = vld [vmem:[%s1505 + $0x80] sm:$0xff]
      %v1518 = vld [vmem:[%s1505 + $0x90] sm:$0xff]
      %v1519 = vld [vmem:[%s1505 + $0x98] sm:$0xff]
      %v1520 = vld [vmem:[%s1505 + $0xa8] sm:$0xff]
      %v1521 = vld [vmem:[%s1505 + $0xb0] sm:$0xff]
      %v1522 = vld [vmem:[%s1505 + $0xc0] sm:$0xff]
      %v1523 = vld [vmem:[%s1505 + $0xc8] sm:$0xff]
      %v1524 = vld [vmem:[%s1505 + $0xd8] sm:$0xff]
      %v1525 = vld [vmem:[%s1505 + $0xe0] sm:$0xff]
      %v1526 = vld [vmem:[%s1505 + $0xf0] sm:$0xff]
      %v1527 = vld [vmem:[%s1505 + $0xf8] sm:$0xff]
      %v1528 = vld [vmem:[%s1505 + $0x108] sm:$0xff]
      %v1529 = vld [vmem:[%s1505 + $0x110] sm:$0xff]
      %v1530 = vld [vmem:[%s1505 + $0x120] sm:$0xff]
      %v1531 = vld [vmem:[%s1505 + $0x128] sm:$0xff]
      %v1532 = vld [vmem:[%s1505 + $0x138] sm:$0xff]
      %v1533 = vld [vmem:[%s1505 + $0x140] sm:$0xff]
      %v1534 = vld [vmem:[%s1505 + $0x150] sm:$0xff]
      %v1535 = vld [vmem:[%s1505 + $0x158] sm:$0xff]
      %v1536 = vld [vmem:[%s1505 + $0x168] sm:$0xff]
      %v1537 = vld [vmem:[%s1505 + $0x170] sm:$0xff]
      %v1538 = vpack.c.bf16 %v1506, %v1506
      %v1539 = vpack.c.bf16 %v1507, %v1507
      %v1540 = vpack.c.bf16 %v1508, %v1508
      %v1541 = vpack.c.bf16 %v1509, %v1509
      %v1542 = vpack.c.bf16 %v1510, %v1510
      %v1543 = vpack.c.bf16 %v1511, %v1511
      %v1544 = vpack.c.bf16 %v1512, %v1512
      %v1545 = vpack.c.bf16 %v1513, %v1513
      %v1546 = vpack.c.bf16 %v1514, %v1514
      %v1547 = vpack.c.bf16 %v1515, %v1515
      %v1548 = vpack.c.bf16 %v1516, %v1516
      %v1549 = vpack.c.bf16 %v1517, %v1517
      %v1550 = vpack.c.bf16 %v1518, %v1518
      %v1551 = vpack.c.bf16 %v1519, %v1519
      %v1552 = vpack.c.bf16 %v1520, %v1520
      %v1553 = vpack.c.bf16 %v1521, %v1521
      %v1554 = vpack.c.bf16 %v1522, %v1522
      %v1555 = vpack.c.bf16 %v1523, %v1523
      %v1556 = vpack.c.bf16 %v1524, %v1524
      %v1557 = vpack.c.bf16 %v1525, %v1525
      %v1558 = vpack.c.bf16 %v1526, %v1526
      %v1559 = vpack.c.bf16 %v1527, %v1527
      %v1560 = vpack.c.bf16 %v1528, %v1528
      %v1561 = vpack.c.bf16 %v1529, %v1529
      %v1562 = vpack.c.bf16 %v1530, %v1530
      %v1563 = vpack.c.bf16 %v1531, %v1531
      %v1564 = vpack.c.bf16 %v1532, %v1532
      %v1565 = vpack.c.bf16 %v1533, %v1533
      %v1566 = vpack.c.bf16 %v1534, %v1534
      %v1567 = vpack.c.bf16 %v1535, %v1535
      %v1568 = vpack.c.bf16 %v1536, %v1536
      %v1569 = vpack.c.bf16 %v1537, %v1537
      %1602 = vrot.lane.b32.xlu0 %v1538, 24
      %v1603 = vpop.permute.xlu0 %1602
      %1604 = vrot.lane.b32.xlu0 %v1539, 24
      %v1605 = vpop.permute.xlu0 %1604
      %1606 = vrot.lane.b32.xlu0 %v1540, 24
      %v1607 = vpop.permute.xlu0 %1606
      %1608 = vrot.lane.b32.xlu0 %v1541, 24
      %v1609 = vpop.permute.xlu0 %1608
      %1610 = vrot.lane.b32.xlu0 %v1542, 24
      %v1611 = vpop.permute.xlu0 %1610
      %1612 = vrot.lane.b32.xlu0 %v1543, 24
      %v1613 = vpop.permute.xlu0 %1612
      %1614 = vrot.lane.b32.xlu0 %v1544, 24
      %v1615 = vpop.permute.xlu0 %1614
      %1616 = vrot.lane.b32.xlu0 %v1545, 24
      %v1617 = vpop.permute.xlu0 %1616
      %1618 = vrot.lane.b32.xlu0 %v1546, 24
      %v1619 = vpop.permute.xlu0 %1618
      %1620 = vrot.lane.b32.xlu0 %v1547, 24
      %v1621 = vpop.permute.xlu0 %1620
      %1622 = vrot.lane.b32.xlu0 %v1548, 24
      %v1623 = vpop.permute.xlu0 %1622
      %1624 = vrot.lane.b32.xlu0 %v1549, 24
      %v1625 = vpop.permute.xlu0 %1624
      %1626 = vrot.lane.b32.xlu0 %v1550, 24
      %v1627 = vpop.permute.xlu0 %1626
      %1628 = vrot.lane.b32.xlu0 %v1551, 24
      %v1629 = vpop.permute.xlu0 %1628
      %1630 = vrot.lane.b32.xlu0 %v1552, 24
      %v1631 = vpop.permute.xlu0 %1630
      %1632 = vrot.lane.b32.xlu0 %v1553, 24
      %v1633 = vpop.permute.xlu0 %1632
      %1634 = vrot.lane.b32.xlu0 %v1554, 24
      %v1635 = vpop.permute.xlu0 %1634
      %1636 = vrot.lane.b32.xlu0 %v1555, 24
      %v1637 = vpop.permute.xlu0 %1636
      %1638 = vrot.lane.b32.xlu0 %v1556, 24
      %v1639 = vpop.permute.xlu0 %1638
      %1640 = vrot.lane.b32.xlu0 %v1557, 24
      %v1641 = vpop.permute.xlu0 %1640
      %1642 = vrot.lane.b32.xlu0 %v1558, 24
      %v1643 = vpop.permute.xlu0 %1642
      %1644 = vrot.lane.b32.xlu0 %v1559, 24
      %v1645 = vpop.permute.xlu0 %1644
      %1646 = vrot.lane.b32.xlu0 %v1560, 24
      %v1647 = vpop.permute.xlu0 %1646
      %1648 = vrot.lane.b32.xlu0 %v1561, 24
      %v1649 = vpop.permute.xlu0 %1648
      %1650 = vrot.lane.b32.xlu0 %v1562, 24
      %v1651 = vpop.permute.xlu0 %1650
      %1652 = vrot.lane.b32.xlu0 %v1563, 24
      %v1653 = vpop.permute.xlu0 %1652
      %1654 = vrot.lane.b32.xlu0 %v1564, 24
      %v1655 = vpop.permute.xlu0 %1654
      %1656 = vrot.lane.b32.xlu0 %v1565, 24
      %v1657 = vpop.permute.xlu0 %1656
      %1658 = vrot.lane.b32.xlu0 %v1566, 24
      %v1659 = vpop.permute.xlu0 %1658
      %1660 = vrot.lane.b32.xlu0 %v1567, 24
      %v1661 = vpop.permute.xlu0 %1660
      %1662 = vrot.lane.b32.xlu0 %v1568, 24
      %v1663 = vpop.permute.xlu0 %1662
      %1664 = vrot.lane.b32.xlu0 %v1569, 24
      %v1665 = vpop.permute.xlu0 %1664
      %vm1698 = vcmask 224448
      %1699 = vst.msk [vmem:[#allocation3] sm:$0xf] %vm1698, %v1603
      %1700 = vst.msk [vmem:[#allocation3 + $0x4] sm:$0xf] %vm1698, %v1605
      %1701 = vst.msk [vmem:[#allocation3 + $0x8] sm:$0xf] %vm1698, %v1607
      %1702 = vst.msk [vmem:[#allocation3 + $0xc] sm:$0xf] %vm1698, %v1609
      %1703 = vst.msk [vmem:[#allocation3 + $0x10] sm:$0xf] %vm1698, %v1611
      %1704 = vst.msk [vmem:[#allocation3 + $0x14] sm:$0xf] %vm1698, %v1613
      %1705 = vst.msk [vmem:[#allocation3 + $0x18] sm:$0xf] %vm1698, %v1615
      %1706 = vst.msk [vmem:[#allocation3 + $0x1c] sm:$0xf] %vm1698, %v1617
      %1707 = vst.msk [vmem:[#allocation3 + $0x20] sm:$0xf] %vm1698, %v1619
      %1708 = vst.msk [vmem:[#allocation3 + $0x24] sm:$0xf] %vm1698, %v1621
      %1709 = vst.msk [vmem:[#allocation3 + $0x28] sm:$0xf] %vm1698, %v1623
      %1710 = vst.msk [vmem:[#allocation3 + $0x2c] sm:$0xf] %vm1698, %v1625
      %1711 = vst.msk [vmem:[#allocation3 + $0x30] sm:$0xf] %vm1698, %v1627
      %1712 = vst.msk [vmem:[#allocation3 + $0x34] sm:$0xf] %vm1698, %v1629
      %1713 = vst.msk [vmem:[#allocation3 + $0x38] sm:$0xf] %vm1698, %v1631
      %1714 = vst.msk [vmem:[#allocation3 + $0x3c] sm:$0xf] %vm1698, %v1633
      %1715 = vst.msk [vmem:[#allocation3 + $0x40] sm:$0xf] %vm1698, %v1635
      %1716 = vst.msk [vmem:[#allocation3 + $0x44] sm:$0xf] %vm1698, %v1637
      %1717 = vst.msk [vmem:[#allocation3 + $0x48] sm:$0xf] %vm1698, %v1639
      %1718 = vst.msk [vmem:[#allocation3 + $0x4c] sm:$0xf] %vm1698, %v1641
      %1719 = vst.msk [vmem:[#allocation3 + $0x50] sm:$0xf] %vm1698, %v1643
      %1720 = vst.msk [vmem:[#allocation3 + $0x54] sm:$0xf] %vm1698, %v1645
      %1721 = vst.msk [vmem:[#allocation3 + $0x58] sm:$0xf] %vm1698, %v1647
      %1722 = vst.msk [vmem:[#allocation3 + $0x5c] sm:$0xf] %vm1698, %v1649
      %1723 = vst.msk [vmem:[#allocation3 + $0x60] sm:$0xf] %vm1698, %v1651
      %1724 = vst.msk [vmem:[#allocation3 + $0x64] sm:$0xf] %vm1698, %v1653
      %1725 = vst.msk [vmem:[#allocation3 + $0x68] sm:$0xf] %vm1698, %v1655
      %1726 = vst.msk [vmem:[#allocation3 + $0x6c] sm:$0xf] %vm1698, %v1657
      %1727 = vst.msk [vmem:[#allocation3 + $0x70] sm:$0xf] %vm1698, %v1659
      %1728 = vst.msk [vmem:[#allocation3 + $0x74] sm:$0xf] %vm1698, %v1661
      %1729 = vst.msk [vmem:[#allocation3 + $0x78] sm:$0xf] %vm1698, %v1663
      %1730 = vst.msk [vmem:[#allocation3 + $0x7c] sm:$0xf] %vm1698, %v1665
      %v1731 = vld [vmem:[%s1505 + $0x1] sm:$0xff]
      %v1732 = vld [vmem:[%s1505 + $0x9] sm:$0xff]
      %v1733 = vld [vmem:[%s1505 + $0x19] sm:$0xff]
      %v1734 = vld [vmem:[%s1505 + $0x21] sm:$0xff]
      %v1735 = vld [vmem:[%s1505 + $0x31] sm:$0xff]
      %v1736 = vld [vmem:[%s1505 + $0x39] sm:$0xff]
      %v1737 = vld [vmem:[%s1505 + $0x49] sm:$0xff]
      %v1738 = vld [vmem:[%s1505 + $0x51] sm:$0xff]
      %v1739 = vld [vmem:[%s1505 + $0x61] sm:$0xff]
      %v1740 = vld [vmem:[%s1505 + $0x69] sm:$0xff]
      %v1741 = vld [vmem:[%s1505 + $0x79] sm:$0xff]
      %v1742 = vld [vmem:[%s1505 + $0x81] sm:$0xff]
      %v1743 = vld [vmem:[%s1505 + $0x91] sm:$0xff]
      %v1744 = vld [vmem:[%s1505 + $0x99] sm:$0xff]
      %v1745 = vld [vmem:[%s1505 + $0xa9] sm:$0xff]
      %v1746 = vld [vmem:[%s1505 + $0xb1] sm:$0xff]
      %v1747 = vld [vmem:[%s1505 + $0xc1] sm:$0xff]
      %v1748 = vld [vmem:[%s1505 + $0xc9] sm:$0xff]
      %v1749 = vld [vmem:[%s1505 + $0xd9] sm:$0xff]
      %v1750 = vld [vmem:[%s1505 + $0xe1] sm:$0xff]
      %v1751 = vld [vmem:[%s1505 + $0xf1] sm:$0xff]
      %v1752 = vld [vmem:[%s1505 + $0xf9] sm:$0xff]
      %v1753 = vld [vmem:[%s1505 + $0x109] sm:$0xff]
      %v1754 = vld [vmem:[%s1505 + $0x111] sm:$0xff]
      %v1755 = vld [vmem:[%s1505 + $0x121] sm:$0xff]
      %v1756 = vld [vmem:[%s1505 + $0x129] sm:$0xff]
      %v1757 = vld [vmem:[%s1505 + $0x139] sm:$0xff]
      %v1758 = vld [vmem:[%s1505 + $0x141] sm:$0xff]
      %v1759 = vld [vmem:[%s1505 + $0x151] sm:$0xff]
      %v1760 = vld [vmem:[%s1505 + $0x159] sm:$0xff]
      %v1761 = vld [vmem:[%s1505 + $0x169] sm:$0xff]
      %v1762 = vld [vmem:[%s1505 + $0x171] sm:$0xff]
      %v1763 = vpack.c.bf16 %v1731, %v1731
      %v1764 = vpack.c.bf16 %v1732, %v1732
      %v1765 = vpack.c.bf16 %v1733, %v1733
      %v1766 = vpack.c.bf16 %v1734, %v1734
      %v1767 = vpack.c.bf16 %v1735, %v1735
      %v1768 = vpack.c.bf16 %v1736, %v1736
      %v1769 = vpack.c.bf16 %v1737, %v1737
      %v1770 = vpack.c.bf16 %v1738, %v1738
      %v1771 = vpack.c.bf16 %v1739, %v1739
      %v1772 = vpack.c.bf16 %v1740, %v1740
      %v1773 = vpack.c.bf16 %v1741, %v1741
      %v1774 = vpack.c.bf16 %v1742, %v1742
      %v1775 = vpack.c.bf16 %v1743, %v1743
      %v1776 = vpack.c.bf16 %v1744, %v1744
      %v1777 = vpack.c.bf16 %v1745, %v1745
      %v1778 = vpack.c.bf16 %v1746, %v1746
      %v1779 = vpack.c.bf16 %v1747, %v1747
      %v1780 = vpack.c.bf16 %v1748, %v1748
      %v1781 = vpack.c.bf16 %v1749, %v1749
      %v1782 = vpack.c.bf16 %v1750, %v1750
      %v1783 = vpack.c.bf16 %v1751, %v1751
      %v1784 = vpack.c.bf16 %v1752, %v1752
      %v1785 = vpack.c.bf16 %v1753, %v1753
      %v1786 = vpack.c.bf16 %v1754, %v1754
      %v1787 = vpack.c.bf16 %v1755, %v1755
      %v1788 = vpack.c.bf16 %v1756, %v1756
      %v1789 = vpack.c.bf16 %v1757, %v1757
      %v1790 = vpack.c.bf16 %v1758, %v1758
      %v1791 = vpack.c.bf16 %v1759, %v1759
      %v1792 = vpack.c.bf16 %v1760, %v1760
      %v1793 = vpack.c.bf16 %v1761, %v1761
      %v1794 = vpack.c.bf16 %v1762, %v1762
      %1827 = vrot.lane.b32.xlu0 %v1763, 28
      %v1828 = vpop.permute.xlu0 %1827
      %1829 = vrot.lane.b32.xlu0 %v1764, 28
      %v1830 = vpop.permute.xlu0 %1829
      %1831 = vrot.lane.b32.xlu0 %v1765, 28
      %v1832 = vpop.permute.xlu0 %1831
      %1833 = vrot.lane.b32.xlu0 %v1766, 28
      %v1834 = vpop.permute.xlu0 %1833
      %1835 = vrot.lane.b32.xlu0 %v1767, 28
      %v1836 = vpop.permute.xlu0 %1835
      %1837 = vrot.lane.b32.xlu0 %v1768, 28
      %v1838 = vpop.permute.xlu0 %1837
      %1839 = vrot.lane.b32.xlu0 %v1769, 28
      %v1840 = vpop.permute.xlu0 %1839
      %1841 = vrot.lane.b32.xlu0 %v1770, 28
      %v1842 = vpop.permute.xlu0 %1841
      %1843 = vrot.lane.b32.xlu0 %v1771, 28
      %v1844 = vpop.permute.xlu0 %1843
      %1845 = vrot.lane.b32.xlu0 %v1772, 28
      %v1846 = vpop.permute.xlu0 %1845
      %1847 = vrot.lane.b32.xlu0 %v1773, 28
      %v1848 = vpop.permute.xlu0 %1847
      %1849 = vrot.lane.b32.xlu0 %v1774, 28
      %v1850 = vpop.permute.xlu0 %1849
      %1851 = vrot.lane.b32.xlu0 %v1775, 28
      %v1852 = vpop.permute.xlu0 %1851
      %1853 = vrot.lane.b32.xlu0 %v1776, 28
      %v1854 = vpop.permute.xlu0 %1853
      %1855 = vrot.lane.b32.xlu0 %v1777, 28
      %v1856 = vpop.permute.xlu0 %1855
      %1857 = vrot.lane.b32.xlu0 %v1778, 28
      %v1858 = vpop.permute.xlu0 %1857
      %1859 = vrot.lane.b32.xlu0 %v1779, 28
      %v1860 = vpop.permute.xlu0 %1859
      %1861 = vrot.lane.b32.xlu0 %v1780, 28
      %v1862 = vpop.permute.xlu0 %1861
      %1863 = vrot.lane.b32.xlu0 %v1781, 28
      %v1864 = vpop.permute.xlu0 %1863
      %1865 = vrot.lane.b32.xlu0 %v1782, 28
      %v1866 = vpop.permute.xlu0 %1865
      %1867 = vrot.lane.b32.xlu0 %v1783, 28
      %v1868 = vpop.permute.xlu0 %1867
      %1869 = vrot.lane.b32.xlu0 %v1784, 28
      %v1870 = vpop.permute.xlu0 %1869
      %1871 = vrot.lane.b32.xlu0 %v1785, 28
      %v1872 = vpop.permute.xlu0 %1871
      %1873 = vrot.lane.b32.xlu0 %v1786, 28
      %v1874 = vpop.permute.xlu0 %1873
      %1875 = vrot.lane.b32.xlu0 %v1787, 28
      %v1876 = vpop.permute.xlu0 %1875
      %1877 = vrot.lane.b32.xlu0 %v1788, 28
      %v1878 = vpop.permute.xlu0 %1877
      %1879 = vrot.lane.b32.xlu0 %v1789, 28
      %v1880 = vpop.permute.xlu0 %1879
      %1881 = vrot.lane.b32.xlu0 %v1790, 28
      %v1882 = vpop.permute.xlu0 %1881
      %1883 = vrot.lane.b32.xlu0 %v1791, 28
      %v1884 = vpop.permute.xlu0 %1883
      %1885 = vrot.lane.b32.xlu0 %v1792, 28
      %v1886 = vpop.permute.xlu0 %1885
      %1887 = vrot.lane.b32.xlu0 %v1793, 28
      %v1888 = vpop.permute.xlu0 %1887
      %1889 = vrot.lane.b32.xlu0 %v1794, 28
      %v1890 = vpop.permute.xlu0 %1889
      %vm1923 = vcmask 257248
      %1924 = vst.msk [vmem:[#allocation3] sm:$0xf] %vm1923, %v1828
      %1925 = vst.msk [vmem:[#allocation3 + $0x4] sm:$0xf] %vm1923, %v1830
      %1926 = vst.msk [vmem:[#allocation3 + $0x8] sm:$0xf] %vm1923, %v1832
      %1927 = vst.msk [vmem:[#allocation3 + $0xc] sm:$0xf] %vm1923, %v1834
      %1928 = vst.msk [vmem:[#allocation3 + $0x10] sm:$0xf] %vm1923, %v1836
      %1929 = vst.msk [vmem:[#allocation3 + $0x14] sm:$0xf] %vm1923, %v1838
      %1930 = vst.msk [vmem:[#allocation3 + $0x18] sm:$0xf] %vm1923, %v1840
      %1931 = vst.msk [vmem:[#allocation3 + $0x1c] sm:$0xf] %vm1923, %v1842
      %1932 = vst.msk [vmem:[#allocation3 + $0x20] sm:$0xf] %vm1923, %v1844
      %1933 = vst.msk [vmem:[#allocation3 + $0x24] sm:$0xf] %vm1923, %v1846
      %1934 = vst.msk [vmem:[#allocation3 + $0x28] sm:$0xf] %vm1923, %v1848
      %1935 = vst.msk [vmem:[#allocation3 + $0x2c] sm:$0xf] %vm1923, %v1850
      %1936 = vst.msk [vmem:[#allocation3 + $0x30] sm:$0xf] %vm1923, %v1852
      %1937 = vst.msk [vmem:[#allocation3 + $0x34] sm:$0xf] %vm1923, %v1854
      %1938 = vst.msk [vmem:[#allocation3 + $0x38] sm:$0xf] %vm1923, %v1856
      %1939 = vst.msk [vmem:[#allocation3 + $0x3c] sm:$0xf] %vm1923, %v1858
      %1940 = vst.msk [vmem:[#allocation3 + $0x40] sm:$0xf] %vm1923, %v1860
      %1941 = vst.msk [vmem:[#allocation3 + $0x44] sm:$0xf] %vm1923, %v1862
      %1942 = vst.msk [vmem:[#allocation3 + $0x48] sm:$0xf] %vm1923, %v1864
      %1943 = vst.msk [vmem:[#allocation3 + $0x4c] sm:$0xf] %vm1923, %v1866
      %1944 = vst.msk [vmem:[#allocation3 + $0x50] sm:$0xf] %vm1923, %v1868
      %1945 = vst.msk [vmem:[#allocation3 + $0x54] sm:$0xf] %vm1923, %v1870
      %1946 = vst.msk [vmem:[#allocation3 + $0x58] sm:$0xf] %vm1923, %v1872
      %1947 = vst.msk [vmem:[#allocation3 + $0x5c] sm:$0xf] %vm1923, %v1874
      %1948 = vst.msk [vmem:[#allocation3 + $0x60] sm:$0xf] %vm1923, %v1876
      %1949 = vst.msk [vmem:[#allocation3 + $0x64] sm:$0xf] %vm1923, %v1878
      %1950 = vst.msk [vmem:[#allocation3 + $0x68] sm:$0xf] %vm1923, %v1880
      %1951 = vst.msk [vmem:[#allocation3 + $0x6c] sm:$0xf] %vm1923, %v1882
      %1952 = vst.msk [vmem:[#allocation3 + $0x70] sm:$0xf] %vm1923, %v1884
      %1953 = vst.msk [vmem:[#allocation3 + $0x74] sm:$0xf] %vm1923, %v1886
      %1954 = vst.msk [vmem:[#allocation3 + $0x78] sm:$0xf] %vm1923, %v1888
      %1955 = vst.msk [vmem:[#allocation3 + $0x7c] sm:$0xf] %vm1923, %v1890
      %v1956 = vld [vmem:[%s1505 + $0x2] sm:$0xff]
      %v1957 = vld [vmem:[%s1505 + $0xa] sm:$0xff]
      %v1958 = vld [vmem:[%s1505 + $0x1a] sm:$0xff]
      %v1959 = vld [vmem:[%s1505 + $0x22] sm:$0xff]
      %v1960 = vld [vmem:[%s1505 + $0x32] sm:$0xff]
      %v1961 = vld [vmem:[%s1505 + $0x3a] sm:$0xff]
      %v1962 = vld [vmem:[%s1505 + $0x4a] sm:$0xff]
      %v1963 = vld [vmem:[%s1505 + $0x52] sm:$0xff]
      %v1964 = vld [vmem:[%s1505 + $0x62] sm:$0xff]
      %v1965 = vld [vmem:[%s1505 + $0x6a] sm:$0xff]
      %v1966 = vld [vmem:[%s1505 + $0x7a] sm:$0xff]
      %v1967 = vld [vmem:[%s1505 + $0x82] sm:$0xff]
      %v1968 = vld [vmem:[%s1505 + $0x92] sm:$0xff]
      %v1969 = vld [vmem:[%s1505 + $0x9a] sm:$0xff]
      %v1970 = vld [vmem:[%s1505 + $0xaa] sm:$0xff]
      %v1971 = vld [vmem:[%s1505 + $0xb2] sm:$0xff]
      %v1972 = vld [vmem:[%s1505 + $0xc2] sm:$0xff]
      %v1973 = vld [vmem:[%s1505 + $0xca] sm:$0xff]
      %v1974 = vld [vmem:[%s1505 + $0xda] sm:$0xff]
      %v1975 = vld [vmem:[%s1505 + $0xe2] sm:$0xff]
      %v1976 = vld [vmem:[%s1505 + $0xf2] sm:$0xff]
      %v1977 = vld [vmem:[%s1505 + $0xfa] sm:$0xff]
      %v1978 = vld [vmem:[%s1505 + $0x10a] sm:$0xff]
      %v1979 = vld [vmem:[%s1505 + $0x112] sm:$0xff]
      %v1980 = vld [vmem:[%s1505 + $0x122] sm:$0xff]
      %v1981 = vld [vmem:[%s1505 + $0x12a] sm:$0xff]
      %v1982 = vld [vmem:[%s1505 + $0x13a] sm:$0xff]
      %v1983 = vld [vmem:[%s1505 + $0x142] sm:$0xff]
      %v1984 = vld [vmem:[%s1505 + $0x152] sm:$0xff]
      %v1985 = vld [vmem:[%s1505 + $0x15a] sm:$0xff]
      %v1986 = vld [vmem:[%s1505 + $0x16a] sm:$0xff]
      %v1987 = vld [vmem:[%s1505 + $0x172] sm:$0xff]
      %v1988 = vpack.c.bf16 %v1956, %v1956
      %v1989 = vpack.c.bf16 %v1957, %v1957
      %v1990 = vpack.c.bf16 %v1958, %v1958
      %v1991 = vpack.c.bf16 %v1959, %v1959
      %v1992 = vpack.c.bf16 %v1960, %v1960
      %v1993 = vpack.c.bf16 %v1961, %v1961
      %v1994 = vpack.c.bf16 %v1962, %v1962
      %v1995 = vpack.c.bf16 %v1963, %v1963
      %v1996 = vpack.c.bf16 %v1964, %v1964
      %v1997 = vpack.c.bf16 %v1965, %v1965
      %v1998 = vpack.c.bf16 %v1966, %v1966
      %v1999 = vpack.c.bf16 %v1967, %v1967
      %v2000 = vpack.c.bf16 %v1968, %v1968
      %v2001 = vpack.c.bf16 %v1969, %v1969
      %v2002 = vpack.c.bf16 %v1970, %v1970
      %v2003 = vpack.c.bf16 %v1971, %v1971
      %v2004 = vpack.c.bf16 %v1972, %v1972
      %v2005 = vpack.c.bf16 %v1973, %v1973
      %v2006 = vpack.c.bf16 %v1974, %v1974
      %v2007 = vpack.c.bf16 %v1975, %v1975
      %v2008 = vpack.c.bf16 %v1976, %v1976
      %v2009 = vpack.c.bf16 %v1977, %v1977
      %v2010 = vpack.c.bf16 %v1978, %v1978
      %v2011 = vpack.c.bf16 %v1979, %v1979
      %v2012 = vpack.c.bf16 %v1980, %v1980
      %v2013 = vpack.c.bf16 %v1981, %v1981
      %v2014 = vpack.c.bf16 %v1982, %v1982
      %v2015 = vpack.c.bf16 %v1983, %v1983
      %v2016 = vpack.c.bf16 %v1984, %v1984
      %v2017 = vpack.c.bf16 %v1985, %v1985
      %v2018 = vpack.c.bf16 %v1986, %v1986
      %v2019 = vpack.c.bf16 %v1987, %v1987
      %2052 = vrot.lane.b32.xlu0 %v1988, 32
      %v2053 = vpop.permute.xlu0 %2052
      %2054 = vrot.lane.b32.xlu0 %v1989, 32
      %v2055 = vpop.permute.xlu0 %2054
      %2056 = vrot.lane.b32.xlu0 %v1990, 32
      %v2057 = vpop.permute.xlu0 %2056
      %2058 = vrot.lane.b32.xlu0 %v1991, 32
      %v2059 = vpop.permute.xlu0 %2058
      %2060 = vrot.lane.b32.xlu0 %v1992, 32
      %v2061 = vpop.permute.xlu0 %2060
      %2062 = vrot.lane.b32.xlu0 %v1993, 32
      %v2063 = vpop.permute.xlu0 %2062
      %2064 = vrot.lane.b32.xlu0 %v1994, 32
      %v2065 = vpop.permute.xlu0 %2064
      %2066 = vrot.lane.b32.xlu0 %v1995, 32
      %v2067 = vpop.permute.xlu0 %2066
      %2068 = vrot.lane.b32.xlu0 %v1996, 32
      %v2069 = vpop.permute.xlu0 %2068
      %2070 = vrot.lane.b32.xlu0 %v1997, 32
      %v2071 = vpop.permute.xlu0 %2070
      %2072 = vrot.lane.b32.xlu0 %v1998, 32
      %v2073 = vpop.permute.xlu0 %2072
      %2074 = vrot.lane.b32.xlu0 %v1999, 32
      %v2075 = vpop.permute.xlu0 %2074
      %2076 = vrot.lane.b32.xlu0 %v2000, 32
      %v2077 = vpop.permute.xlu0 %2076
      %2078 = vrot.lane.b32.xlu0 %v2001, 32
      %v2079 = vpop.permute.xlu0 %2078
      %2080 = vrot.lane.b32.xlu0 %v2002, 32
      %v2081 = vpop.permute.xlu0 %2080
      %2082 = vrot.lane.b32.xlu0 %v2003, 32
      %v2083 = vpop.permute.xlu0 %2082
      %2084 = vrot.lane.b32.xlu0 %v2004, 32
      %v2085 = vpop.permute.xlu0 %2084
      %2086 = vrot.lane.b32.xlu0 %v2005, 32
      %v2087 = vpop.permute.xlu0 %2086
      %2088 = vrot.lane.b32.xlu0 %v2006, 32
      %v2089 = vpop.permute.xlu0 %2088
      %2090 = vrot.lane.b32.xlu0 %v2007, 32
      %v2091 = vpop.permute.xlu0 %2090
      %2092 = vrot.lane.b32.xlu0 %v2008, 32
      %v2093 = vpop.permute.xlu0 %2092
      %2094 = vrot.lane.b32.xlu0 %v2009, 32
      %v2095 = vpop.permute.xlu0 %2094
      %2096 = vrot.lane.b32.xlu0 %v2010, 32
      %v2097 = vpop.permute.xlu0 %2096
      %2098 = vrot.lane.b32.xlu0 %v2011, 32
      %v2099 = vpop.permute.xlu0 %2098
      %2100 = vrot.lane.b32.xlu0 %v2012, 32
      %v2101 = vpop.permute.xlu0 %2100
      %2102 = vrot.lane.b32.xlu0 %v2013, 32
      %v2103 = vpop.permute.xlu0 %2102
      %2104 = vrot.lane.b32.xlu0 %v2014, 32
      %v2105 = vpop.permute.xlu0 %2104
      %2106 = vrot.lane.b32.xlu0 %v2015, 32
      %v2107 = vpop.permute.xlu0 %2106
      %2108 = vrot.lane.b32.xlu0 %v2016, 32
      %v2109 = vpop.permute.xlu0 %2108
      %2110 = vrot.lane.b32.xlu0 %v2017, 32
      %v2111 = vpop.permute.xlu0 %2110
      %2112 = vrot.lane.b32.xlu0 %v2018, 32
      %v2113 = vpop.permute.xlu0 %2112
      %2114 = vrot.lane.b32.xlu0 %v2019, 32
      %v2115 = vpop.permute.xlu0 %2114
      %vm2148 = vcmask 290048
      %2149 = vst.msk [vmem:[#allocation3] sm:$0xf] %vm2148, %v2053
      %2150 = vst.msk [vmem:[#allocation3 + $0x4] sm:$0xf] %vm2148, %v2055
      %2151 = vst.msk [vmem:[#allocation3 + $0x8] sm:$0xf] %vm2148, %v2057
      %2152 = vst.msk [vmem:[#allocation3 + $0xc] sm:$0xf] %vm2148, %v2059
      %2153 = vst.msk [vmem:[#allocation3 + $0x10] sm:$0xf] %vm2148, %v2061
      %2154 = vst.msk [vmem:[#allocation3 + $0x14] sm:$0xf] %vm2148, %v2063
      %2155 = vst.msk [vmem:[#allocation3 + $0x18] sm:$0xf] %vm2148, %v2065
      %2156 = vst.msk [vmem:[#allocation3 + $0x1c] sm:$0xf] %vm2148, %v2067
      %2157 = vst.msk [vmem:[#allocation3 + $0x20] sm:$0xf] %vm2148, %v2069
      %2158 = vst.msk [vmem:[#allocation3 + $0x24] sm:$0xf] %vm2148, %v2071
      %2159 = vst.msk [vmem:[#allocation3 + $0x28] sm:$0xf] %vm2148, %v2073
      %2160 = vst.msk [vmem:[#allocation3 + $0x2c] sm:$0xf] %vm2148, %v2075
      %2161 = vst.msk [vmem:[#allocation3 + $0x30] sm:$0xf] %vm2148, %v2077
      %2162 = vst.msk [vmem:[#allocation3 + $0x34] sm:$0xf] %vm2148, %v2079
      %2163 = vst.msk [vmem:[#allocation3 + $0x38] sm:$0xf] %vm2148, %v2081
      %2164 = vst.msk [vmem:[#allocation3 + $0x3c] sm:$0xf] %vm2148, %v2083
      %2165 = vst.msk [vmem:[#allocation3 + $0x40] sm:$0xf] %vm2148, %v2085
      %2166 = vst.msk [vmem:[#allocation3 + $0x44] sm:$0xf] %vm2148, %v2087
      %2167 = vst.msk [vmem:[#allocation3 + $0x48] sm:$0xf] %vm2148, %v2089
      %2168 = vst.msk [vmem:[#allocation3 + $0x4c] sm:$0xf] %vm2148, %v2091
      %2169 = vst.msk [vmem:[#allocation3 + $0x50] sm:$0xf] %vm2148, %v2093
      %2170 = vst.msk [vmem:[#allocation3 + $0x54] sm:$0xf] %vm2148, %v2095
      %2171 = vst.msk [vmem:[#allocation3 + $0x58] sm:$0xf] %vm2148, %v2097
      %2172 = vst.msk [vmem:[#allocation3 + $0x5c] sm:$0xf] %vm2148, %v2099
      %2173 = vst.msk [vmem:[#allocation3 + $0x60] sm:$0xf] %vm2148, %v2101
      %2174 = vst.msk [vmem:[#allocation3 + $0x64] sm:$0xf] %vm2148, %v2103
      %2175 = vst.msk [vmem:[#allocation3 + $0x68] sm:$0xf] %vm2148, %v2105
      %2176 = vst.msk [vmem:[#allocation3 + $0x6c] sm:$0xf] %vm2148, %v2107
      %2177 = vst.msk [vmem:[#allocation3 + $0x70] sm:$0xf] %vm2148, %v2109
      %2178 = vst.msk [vmem:[#allocation3 + $0x74] sm:$0xf] %vm2148, %v2111
      %2179 = vst.msk [vmem:[#allocation3 + $0x78] sm:$0xf] %vm2148, %v2113
      %2180 = vst.msk [vmem:[#allocation3 + $0x7c] sm:$0xf] %vm2148, %v2115
      %v2181 = vld [vmem:[#allocation3] sm:$0xf]
      %v2182 = vld [vmem:[#allocation3 + $0x4] sm:$0xf]
      %v2183 = vld [vmem:[#allocation3 + $0x8] sm:$0xf]
      %v2184 = vld [vmem:[#allocation3 + $0xc] sm:$0xf]
      %v2185 = vld [vmem:[#allocation3 + $0x10] sm:$0xf]
      %v2186 = vld [vmem:[#allocation3 + $0x14] sm:$0xf]
      %v2187 = vld [vmem:[#allocation3 + $0x18] sm:$0xf]
      %v2188 = vld [vmem:[#allocation3 + $0x1c] sm:$0xf]
      %v2189 = vld [vmem:[#allocation3 + $0x20] sm:$0xf]
      %v2190 = vld [vmem:[#allocation3 + $0x24] sm:$0xf]
      %v2191 = vld [vmem:[#allocation3 + $0x28] sm:$0xf]
      %v2192 = vld [vmem:[#allocation3 + $0x2c] sm:$0xf]
      %v2193 = vld [vmem:[#allocation3 + $0x30] sm:$0xf]
      %v2194 = vld [vmem:[#allocation3 + $0x34] sm:$0xf]
      %v2195 = vld [vmem:[#allocation3 + $0x38] sm:$0xf]
      %v2196 = vld [vmem:[#allocation3 + $0x3c] sm:$0xf]
      %v2197 = vld [vmem:[#allocation3 + $0x40] sm:$0xf]
      %v2198 = vld [vmem:[#allocation3 + $0x44] sm:$0xf]
      %v2199 = vld [vmem:[#allocation3 + $0x48] sm:$0xf]
      %v2200 = vld [vmem:[#allocation3 + $0x4c] sm:$0xf]
      %v2201 = vld [vmem:[#allocation3 + $0x50] sm:$0xf]
      %v2202 = vld [vmem:[#allocation3 + $0x54] sm:$0xf]
      %v2203 = vld [vmem:[#allocation3 + $0x58] sm:$0xf]
      %v2204 = vld [vmem:[#allocation3 + $0x5c] sm:$0xf]
      %v2205 = vld [vmem:[#allocation3 + $0x60] sm:$0xf]
      %v2206 = vld [vmem:[#allocation3 + $0x64] sm:$0xf]
      %v2207 = vld [vmem:[#allocation3 + $0x68] sm:$0xf]
      %v2208 = vld [vmem:[#allocation3 + $0x6c] sm:$0xf]
      %v2209 = vld [vmem:[#allocation3 + $0x70] sm:$0xf]
      %v2210 = vld [vmem:[#allocation3 + $0x74] sm:$0xf]
      %v2211 = vld [vmem:[#allocation3 + $0x78] sm:$0xf]
      %v2212 = vld [vmem:[#allocation3 + $0x7c] sm:$0xf]
      %v2213 = vld [vmem:[%s1] sm:$0xf]
      %v2214 = vld [vmem:[%s1 + $0x4] sm:$0xf]
      %v2215 = vld [vmem:[%s1 + $0x8] sm:$0xf]
      %v2216 = vld [vmem:[%s1 + $0xc] sm:$0xf]
      %v2217 = vld [vmem:[%s1 + $0x10] sm:$0x3]
      %v2218 = vld [vmem:[%s2] sm:$0x1]
      %v2220 = vperm.slane %v2218, 0
      %v2254 = vunpack.c.l.b16 %v2181
      %v2255 = vunpack.c.l.b16 %v2182
      %v2256 = vunpack.c.l.b16 %v2183
      %v2257 = vunpack.c.l.b16 %v2184
      %v2258 = vunpack.c.l.b16 %v2185
      %v2259 = vunpack.c.l.b16 %v2186
      %v2260 = vunpack.c.l.b16 %v2187
      %v2261 = vunpack.c.l.b16 %v2188
      %v2262 = vunpack.c.l.b16 %v2189
      %v2263 = vunpack.c.l.b16 %v2190
      %v2264 = vunpack.c.l.b16 %v2191
      %v2265 = vunpack.c.l.b16 %v2192
      %v2266 = vunpack.c.l.b16 %v2193
      %v2267 = vunpack.c.l.b16 %v2194
      %v2268 = vunpack.c.l.b16 %v2195
      %v2269 = vunpack.c.l.b16 %v2196
      %v2270 = vunpack.c.l.b16 %v2197
      %v2271 = vunpack.c.l.b16 %v2198
      %v2272 = vunpack.c.l.b16 %v2199
      %v2273 = vunpack.c.l.b16 %v2200
      %v2274 = vunpack.c.l.b16 %v2201
      %v2275 = vunpack.c.l.b16 %v2202
      %v2276 = vunpack.c.l.b16 %v2203
      %v2277 = vunpack.c.l.b16 %v2204
      %v2278 = vunpack.c.l.b16 %v2205
      %v2279 = vunpack.c.l.b16 %v2206
      %v2280 = vunpack.c.l.b16 %v2207
      %v2281 = vunpack.c.l.b16 %v2208
      %v2282 = vunpack.c.l.b16 %v2209
      %v2283 = vunpack.c.l.b16 %v2210
      %v2284 = vunpack.c.l.b16 %v2211
      %v2285 = vunpack.c.l.b16 %v2212
      %v2286 = vpack.c.b16 %v2255, %v2254
      %v2287 = vpack.c.b16 %v2257, %v2256
      %v2288 = vpack.c.b16 %v2259, %v2258
      %v2289 = vpack.c.b16 %v2261, %v2260
      %v2290 = vpack.c.b16 %v2263, %v2262
      %v2291 = vpack.c.b16 %v2265, %v2264
      %v2292 = vpack.c.b16 %v2267, %v2266
      %v2293 = vpack.c.b16 %v2269, %v2268
      %v2294 = vpack.c.b16 %v2271, %v2270
      %v2295 = vpack.c.b16 %v2273, %v2272
      %v2296 = vpack.c.b16 %v2275, %v2274
      %v2297 = vpack.c.b16 %v2277, %v2276
      %v2298 = vpack.c.b16 %v2279, %v2278
      %v2299 = vpack.c.b16 %v2281, %v2280
      %v2300 = vpack.c.b16 %v2283, %v2282
      %v2301 = vpack.c.b16 %v2285, %v2284
      %v2307 = vunpack.c.l.b16 %v2213
      %v2308 = vunpack.c.l.b16 %v2214
      %v2309 = vunpack.c.l.b16 %v2215
      %v2310 = vunpack.c.l.b16 %v2216
      %v2311 = vunpack.c.l.b16 %v2217
      %v2312 = vpack.c.b16 %v2308, %v2307
      %v2313 = vpack.c.b16 %v2310, %v2309
      %v2314 = vpack.c.b16 %v2311, %v2311
      %vm2317 = vcmask 293888
      %v2319 = vsel %vm2317, %v2286, 0
      %v2322 = vsel %vm2317, %v2287, 0
      %v2325 = vsel %vm2317, %v2288, 0
      %v2328 = vsel %vm2317, %v2289, 0
      %v2331 = vsel %vm2317, %v2290, 0
      %v2334 = vsel %vm2317, %v2291, 0
      %v2337 = vsel %vm2317, %v2292, 0
      %v2340 = vsel %vm2317, %v2293, 0
      %v2343 = vsel %vm2317, %v2294, 0
      %v2346 = vsel %vm2317, %v2295, 0
      %v2349 = vsel %vm2317, %v2296, 0
      %v2352 = vsel %vm2317, %v2297, 0
      %v2355 = vsel %vm2317, %v2298, 0
      %v2358 = vsel %vm2317, %v2299, 0
      %v2361 = vsel %vm2317, %v2300, 0
      %v2364 = vsel %vm2317, %v2301, 0
      %vm2366 = vcmask 1041408
      %v2368 = vsel %vm2366, %v2314, 0
      %2370 = vmatpush.bf16.msra.mxu0 0
      %2371 = vmatpush.bf16.msra.mxu0 0
      %2372 = vmatpush.bf16.msra.mxu0 0
      %2373 = vmatpush.bf16.msra.mxu0 0
      %2374 = vmatpush.bf16.msra.mxu0 0
      %2375 = vmatpush.bf16.msra.mxu0 %v2368
      %2376 = vmatpush.bf16.msra.mxu0 %v2313
      %2377 = vmatpush.bf16.msra.mxu0 %v2312
      %2378 = vmatmul.bf16.gmra.mxu0 %v2319
      %v2379 = vpop.f32.mrf.mxu0
      %v2380 = vadd.f32 %v2220, %v2379
      %v2381 = vpop.f32.mrf.mxu0
      %v2382 = vadd.f32 %v2220, %v2381
      %2383 = vmatmul.bf16.gmra.mxu0 %v2322
      %v2384 = vpop.f32.mrf.mxu0
      %v2385 = vadd.f32 %v2220, %v2384
      %v2386 = vpop.f32.mrf.mxu0
      %v2387 = vadd.f32 %v2220, %v2386
      %2388 = vmatmul.bf16.gmra.mxu0 %v2325
      %v2389 = vpop.f32.mrf.mxu0
      %v2390 = vadd.f32 %v2220, %v2389
      %v2391 = vpop.f32.mrf.mxu0
      %v2392 = vadd.f32 %v2220, %v2391
      %2393 = vmatmul.bf16.gmra.mxu0 %v2328
      %v2394 = vpop.f32.mrf.mxu0
      %v2395 = vadd.f32 %v2220, %v2394
      %v2396 = vpop.f32.mrf.mxu0
      %v2397 = vadd.f32 %v2220, %v2396
      %2398 = vmatmul.bf16.gmra.mxu0 %v2331
      %v2399 = vpop.f32.mrf.mxu0
      %v2400 = vadd.f32 %v2220, %v2399
      %v2401 = vpop.f32.mrf.mxu0
      %v2402 = vadd.f32 %v2220, %v2401
      %2403 = vmatmul.bf16.gmra.mxu0 %v2334
      %v2404 = vpop.f32.mrf.mxu0
      %v2405 = vadd.f32 %v2220, %v2404
      %v2406 = vpop.f32.mrf.mxu0
      %v2407 = vadd.f32 %v2220, %v2406
      %2408 = vmatmul.bf16.gmra.mxu0 %v2337
      %v2409 = vpop.f32.mrf.mxu0
      %v2410 = vadd.f32 %v2220, %v2409
      %v2411 = vpop.f32.mrf.mxu0
      %v2412 = vadd.f32 %v2220, %v2411
      %2413 = vmatmul.bf16.gmra.mxu0 %v2340
      %v2414 = vpop.f32.mrf.mxu0
      %v2415 = vadd.f32 %v2220, %v2414
      %v2416 = vpop.f32.mrf.mxu0
      %v2417 = vadd.f32 %v2220, %v2416
      %2418 = vmatmul.bf16.gmra.mxu0 %v2343
      %v2419 = vpop.f32.mrf.mxu0
      %v2420 = vadd.f32 %v2220, %v2419
      %v2421 = vpop.f32.mrf.mxu0
      %v2422 = vadd.f32 %v2220, %v2421
      %2423 = vmatmul.bf16.gmra.mxu0 %v2346
      %v2424 = vpop.f32.mrf.mxu0
      %v2425 = vadd.f32 %v2220, %v2424
      %v2426 = vpop.f32.mrf.mxu0
      %v2427 = vadd.f32 %v2220, %v2426
      %2428 = vmatmul.bf16.gmra.mxu0 %v2349
      %v2429 = vpop.f32.mrf.mxu0
      %v2430 = vadd.f32 %v2220, %v2429
      %v2431 = vpop.f32.mrf.mxu0
      %v2432 = vadd.f32 %v2220, %v2431
      %2433 = vmatmul.bf16.gmra.mxu0 %v2352
      %v2434 = vpop.f32.mrf.mxu0
      %v2435 = vadd.f32 %v2220, %v2434
      %v2436 = vpop.f32.mrf.mxu0
      %v2437 = vadd.f32 %v2220, %v2436
      %2438 = vmatmul.bf16.gmra.mxu0 %v2355
      %v2439 = vpop.f32.mrf.mxu0
      %v2440 = vadd.f32 %v2220, %v2439
      %v2441 = vpop.f32.mrf.mxu0
      %v2442 = vadd.f32 %v2220, %v2441
      %2443 = vmatmul.bf16.gmra.mxu0 %v2358
      %v2444 = vpop.f32.mrf.mxu0
      %v2445 = vadd.f32 %v2220, %v2444
      %v2446 = vpop.f32.mrf.mxu0
      %v2447 = vadd.f32 %v2220, %v2446
      %2448 = vmatmul.bf16.gmra.mxu0 %v2361
      %v2449 = vpop.f32.mrf.mxu0
      %v2450 = vadd.f32 %v2220, %v2449
      %v2451 = vpop.f32.mrf.mxu0
      %v2452 = vadd.f32 %v2220, %v2451
      %2453 = vmatmul.bf16.gmra.mxu0 %v2364
      %v2454 = vpop.f32.mrf.mxu0
      %v2455 = vadd.f32 %v2220, %v2454
      %v2456 = vpop.f32.mrf.mxu0
      %v2457 = vadd.f32 %v2220, %v2456
      %2458 = vdwg.mxu0
      %v2459 = vmax.f32 %v2380, 0.0
      %v2460 = vmax.f32 %v2382, 0.0
      %v2461 = vmax.f32 %v2385, 0.0
      %v2462 = vmax.f32 %v2387, 0.0
      %v2463 = vmax.f32 %v2390, 0.0
      %v2464 = vmax.f32 %v2392, 0.0
      %v2465 = vmax.f32 %v2395, 0.0
      %v2466 = vmax.f32 %v2397, 0.0
      %v2467 = vmax.f32 %v2400, 0.0
      %v2468 = vmax.f32 %v2402, 0.0
      %v2469 = vmax.f32 %v2405, 0.0
      %v2470 = vmax.f32 %v2407, 0.0
      %v2471 = vmax.f32 %v2410, 0.0
      %v2472 = vmax.f32 %v2412, 0.0
      %v2473 = vmax.f32 %v2415, 0.0
      %v2474 = vmax.f32 %v2417, 0.0
      %v2475 = vmax.f32 %v2420, 0.0
      %v2476 = vmax.f32 %v2422, 0.0
      %v2477 = vmax.f32 %v2425, 0.0
      %v2478 = vmax.f32 %v2427, 0.0
      %v2479 = vmax.f32 %v2430, 0.0
      %v2480 = vmax.f32 %v2432, 0.0
      %v2481 = vmax.f32 %v2435, 0.0
      %v2482 = vmax.f32 %v2437, 0.0
      %v2483 = vmax.f32 %v2440, 0.0
      %v2484 = vmax.f32 %v2442, 0.0
      %v2485 = vmax.f32 %v2445, 0.0
      %v2486 = vmax.f32 %v2447, 0.0
      %v2487 = vmax.f32 %v2450, 0.0
      %v2488 = vmax.f32 %v2452, 0.0
      %v2489 = vmax.f32 %v2455, 0.0
      %v2490 = vmax.f32 %v2457, 0.0
      %v2491 = vpack.c.bf16 %v2459, %v2459
      %v2492 = vpack.c.bf16 %v2460, %v2460
      %v2493 = vpack.c.bf16 %v2461, %v2461
      %v2494 = vpack.c.bf16 %v2462, %v2462
      %v2495 = vpack.c.bf16 %v2463, %v2463
      %v2496 = vpack.c.bf16 %v2464, %v2464
      %v2497 = vpack.c.bf16 %v2465, %v2465
      %v2498 = vpack.c.bf16 %v2466, %v2466
      %v2499 = vpack.c.bf16 %v2467, %v2467
      %v2500 = vpack.c.bf16 %v2468, %v2468
      %v2501 = vpack.c.bf16 %v2469, %v2469
      %v2502 = vpack.c.bf16 %v2470, %v2470
      %v2503 = vpack.c.bf16 %v2471, %v2471
      %v2504 = vpack.c.bf16 %v2472, %v2472
      %v2505 = vpack.c.bf16 %v2473, %v2473
      %v2506 = vpack.c.bf16 %v2474, %v2474
      %v2507 = vpack.c.bf16 %v2475, %v2475
      %v2508 = vpack.c.bf16 %v2476, %v2476
      %v2509 = vpack.c.bf16 %v2477, %v2477
      %v2510 = vpack.c.bf16 %v2478, %v2478
      %v2511 = vpack.c.bf16 %v2479, %v2479
      %v2512 = vpack.c.bf16 %v2480, %v2480
      %v2513 = vpack.c.bf16 %v2481, %v2481
      %v2514 = vpack.c.bf16 %v2482, %v2482
      %v2515 = vpack.c.bf16 %v2483, %v2483
      %v2516 = vpack.c.bf16 %v2484, %v2484
      %v2517 = vpack.c.bf16 %v2485, %v2485
      %v2518 = vpack.c.bf16 %v2486, %v2486
      %v2519 = vpack.c.bf16 %v2487, %v2487
      %v2520 = vpack.c.bf16 %v2488, %v2488
      %v2521 = vpack.c.bf16 %v2489, %v2489
      %v2522 = vpack.c.bf16 %v2490, %v2490
      %vm2523 = vcmask 60416
      %2524 = vst.msk [vmem:[%s170] sm:$0xf] %vm2523, %v2491
      %2525 = vst.msk [vmem:[%s170 + $0x4] sm:$0xf] %vm2523, %v2492
      %2526 = vst.msk [vmem:[%s170 + $0x8] sm:$0xf] %vm2523, %v2493
      %2527 = vst.msk [vmem:[%s170 + $0xc] sm:$0xf] %vm2523, %v2494
      %2528 = vst.msk [vmem:[%s170 + $0x10] sm:$0xf] %vm2523, %v2495
      %2529 = vst.msk [vmem:[%s170 + $0x14] sm:$0xf] %vm2523, %v2496
      %2530 = vst.msk [vmem:[%s170 + $0x18] sm:$0xf] %vm2523, %v2497
      %2531 = vst.msk [vmem:[%s170 + $0x1c] sm:$0xf] %vm2523, %v2498
      %2532 = vst.msk [vmem:[%s170 + $0x20] sm:$0xf] %vm2523, %v2499
      %2533 = vst.msk [vmem:[%s170 + $0x24] sm:$0xf] %vm2523, %v2500
      %2534 = vst.msk [vmem:[%s170 + $0x28] sm:$0xf] %vm2523, %v2501
      %2535 = vst.msk [vmem:[%s170 + $0x2c] sm:$0xf] %vm2523, %v2502
      %2536 = vst.msk [vmem:[%s170 + $0x30] sm:$0xf] %vm2523, %v2503
      %2537 = vst.msk [vmem:[%s170 + $0x34] sm:$0xf] %vm2523, %v2504
      %2538 = vst.msk [vmem:[%s170 + $0x38] sm:$0xf] %vm2523, %v2505
      %2539 = vst.msk [vmem:[%s170 + $0x3c] sm:$0xf] %vm2523, %v2506
      %2540 = vst.msk [vmem:[%s170 + $0x40] sm:$0xf] %vm2523, %v2507
      %2541 = vst.msk [vmem:[%s170 + $0x44] sm:$0xf] %vm2523, %v2508
      %2542 = vst.msk [vmem:[%s170 + $0x48] sm:$0xf] %vm2523, %v2509
      %2543 = vst.msk [vmem:[%s170 + $0x4c] sm:$0xf] %vm2523, %v2510
      %2544 = vst.msk [vmem:[%s170 + $0x50] sm:$0xf] %vm2523, %v2511
      %2545 = vst.msk [vmem:[%s170 + $0x54] sm:$0xf] %vm2523, %v2512
      %2546 = vst.msk [vmem:[%s170 + $0x58] sm:$0xf] %vm2523, %v2513
      %2547 = vst.msk [vmem:[%s170 + $0x5c] sm:$0xf] %vm2523, %v2514
      %2548 = vst.msk [vmem:[%s170 + $0x60] sm:$0xf] %vm2523, %v2515
      %2549 = vst.msk [vmem:[%s170 + $0x64] sm:$0xf] %vm2523, %v2516
      %2550 = vst.msk [vmem:[%s170 + $0x68] sm:$0xf] %vm2523, %v2517
      %2551 = vst.msk [vmem:[%s170 + $0x6c] sm:$0xf] %vm2523, %v2518
      %2552 = vst.msk [vmem:[%s170 + $0x70] sm:$0xf] %vm2523, %v2519
      %2553 = vst.msk [vmem:[%s170 + $0x74] sm:$0xf] %vm2523, %v2520
      %2554 = vst.msk [vmem:[%s170 + $0x78] sm:$0xf] %vm2523, %v2521
      %2555 = vst.msk [vmem:[%s170 + $0x7c] sm:$0xf] %vm2523, %v2522
      %p2556 = scmp.lt.s32.totalorder %s14, 1
      %s2557 = scalar_select %p2556, %s14, 1
      %s2558 = smul.addr %s2557, 32
      %s2559 = smul.addr %s2558, 4
      %s2560 = scalar_lea.vmem %s3, %s2559
      // Predicated region
      $region33: #{tpu_custom_call.1} parent=31 // pred_check
        %p2561 = pneg %p100
      $region34: #{tpu_custom_call.1} parent=31 // pred_check_branch
        %2563 = sbr.rel (%p2561) target = $region36
      $region35: #{tpu_custom_call.1} parent=31 // pred_region
        _
      $region36: #{tpu_custom_call.1} parent=31 // pred_fallthru
        _
    $region32: #{tpu_custom_call.1} parent=5 // pred_fallthru
      _
    %p2564 = scmp.le.s32.totalorder 2, %s9
    // Predicated region
    $region37: #{tpu_custom_call.1} parent=5 // pred_check
      %p2565 = pneg %p2564
    $region38: #{tpu_custom_call.1} parent=5 // pred_check_branch
      %2567 = sbr.rel (%p2565) target = $region40
    $region39: #{tpu_custom_call.1} parent=5 // pred_region
      %s2568 = ssub.s32 %s9, 2
      // Predicated region
      $region41: #{tpu_custom_call.1} parent=39 // pred_check
        %p2569 = pneg %p106
      $region42: #{tpu_custom_call.1} parent=39 // pred_check_branch
        %2571 = sbr.rel (%p2569) target = $region44
      $region43: #{tpu_custom_call.1} parent=39 // pred_region
        %p2572 = scmp.lt.s32.totalorder %s15, 1
        %s2573 = scalar_select %p2572, %s15, 1
        %s2574 = smul.addr %s2573, 32
        %s2575 = smul.addr %s2574, 4
        %s2576 = scalar_lea.vmem %s3, %s2575
      $region44: #{tpu_custom_call.1} parent=39 // pred_fallthru
        _
    $region40: #{tpu_custom_call.1} parent=5 // pred_fallthru
      _
  $region6: #{tpu_custom_call.1} parent=0 // loop_footer
    %s13 = sadd.s32 1, %s9
  $region7: #{tpu_custom_call.1} parent=0 // loop_footer_branch
    %8 = sbr.rel target = $region3
  $region8: #{tpu_custom_call.1} parent=0 // loop_exit
    _

</llo_original>
